<compile_context>
chip_gen: v7x
topology: tpu7x:2x2x1
jax: 0.10.0
libtpu: 0.0.40
codegen_flags: <defaults>
</compile_context>

<pallas_src>
import math

import jax
import jax.numpy as jnp
import numpy as np
from jax.experimental import pallas as pl
from jax.experimental.pallas import tpu as pltpu


def _make_mha_kernel(num_heads, d_head, has_mask, return_attn):
    scale = 1.0 / math.sqrt(d_head)

    def kernel(*refs):
        q_ref, k_ref, v_ref = refs[0], refs[1], refs[2]
        i = 3
        if has_mask:
            bias_ref = refs[i]
            i += 1
        (wq_ref, bq_ref, wk_ref, bk_ref,
         wv_ref, bv_ref, wo_ref, bo_ref) = refs[i:i + 8]
        i += 8
        out_ref = refs[i]
        i += 1
        if return_attn:
            attn_ref = refs[i]
            i += 1
        ctx_ref = refs[i]                 # VMEM scratch (H, TQ, d_head) f32

        h = pl.program_id(2)              # head index (innermost, "arbitrary")
        cdt = q_ref.dtype                 # dtype fed to the MXU (f32 or bf16)

        x_q = q_ref[0]                    # (TQ, D)
        x_k = k_ref[0]                    # (Sk, D)
        x_v = v_ref[0]                    # (Sk, D)

        def proj(x, w_ref, b_ref):
            # nn.Linear row-slice: y = x @ W_h.T + b_h ; W_h: (d_head, D).
            # Contraction over the full d_model -> full-width MXU K dim.
            y = jax.lax.dot_general(
                x, w_ref[0], (((1,), (1,)), ((), ())),
                preferred_element_type=jnp.float32)
            return y + b_ref[0]           # (rows, d_head), f32

        qh = proj(x_q, wq_ref, bq_ref) * scale   # fold 1/sqrt(d_head) once into q
        kh = proj(x_k, wk_ref, bk_ref)
        vh = proj(x_v, wv_ref, bv_ref)

        # scores = (q * scale) @ k^T, accumulated in f32
        scores = jax.lax.dot_general(
            qh.astype(cdt), kh.astype(cdt), (((1,), (1,)), ((), ())),
            preferred_element_type=jnp.float32)  # (TQ, Sk)
        if has_mask:
            scores = scores + bias_ref[0, 0]     # precomputed additive -1e9/0 bias

        # softmax over keys: exp on EUP, approximate reciprocal on EUP, one multiply
        m = jnp.max(scores, axis=-1, keepdims=True)
        e = jnp.exp(scores - m)
        w = e * pl.reciprocal(jnp.sum(e, axis=-1, keepdims=True), approx=True)

        if return_attn:
            attn_ref[0, 0] = w.astype(attn_ref.dtype)

        # Stage this head's context; the output projection happens once, below.
        ctx_ref[h] = jnp.dot(w.astype(cdt), vh.astype(cdt),
                             preferred_element_type=jnp.float32)

        # Single full-width (TQ, D) @ (D, D) output projection at the last head.
        @pl.when(h == num_heads - 1)
        def _():
            ctx = jnp.concatenate(
                [ctx_ref[hh] for hh in range(num_heads)], axis=-1)  # (TQ, D)
            out = jax.lax.dot_general(
                ctx.astype(cdt), wo_ref[...], (((1,), (1,)), ((), ())),
                preferred_element_type=jnp.float32) + bo_ref[...]
            out_ref[0] = out.astype(out_ref.dtype)

    return kernel


def multi_head_attention(Q, K, V, params, num_heads, mask=None,
                         return_attn=True, compute_dtype=None, block_q=None):
    """Pallas TPU forward pass of the PyTorch MultiHeadAttention module.

    params = (W_q, b_q, W_k, b_k, W_v, b_v, W_o, b_o), W: (D, D) (out, in), b: (D,).
    Returns (output, attn_weights) like the module, or just output when
    return_attn=False.
    """
    wq, bq, wk, bk, wv, bv, wo, bo = params
    B, Sq, D = Q.shape
    Sk = K.shape[1]
    assert D % num_heads == 0, "d_model must be divisible by num_heads"
    d_head = D // num_heads
    out_dtype = Q.dtype
    f32 = jnp.float32

    if compute_dtype is not None:
        Q, K, V = (x.astype(compute_dtype) for x in (Q, K, V))
        wq, wk, wv, wo = (w.astype(compute_dtype) for w in (wq, wk, wv, wo))

    if block_q is None:
        block_q = 128 if Sq % 128 == 0 else Sq
    assert Sq % block_q == 0, "block_q must divide the query length"
    n_q = Sq // block_q

    # Per-head weight layout (H, d_head, D): rows h*d_head:(h+1)*d_head of W.
    wq_h = wq.reshape(num_heads, d_head, D)
    wk_h = wk.reshape(num_heads, d_head, D)
    wv_h = wv.reshape(num_heads, d_head, D)
    bq_h = bq.astype(f32).reshape(num_heads, 1, d_head)
    bk_h = bk.astype(f32).reshape(num_heads, 1, d_head)
    bv_h = bv.astype(f32).reshape(num_heads, 1, d_head)
    bo_2 = bo.astype(f32).reshape(1, D)

    has_mask = mask is not None

    act_q_spec = pl.BlockSpec((1, block_q, D), lambda b, qi, h: (b, qi, 0))
    act_kv_spec = pl.BlockSpec((1, Sk, D), lambda b, qi, h: (b, 0, 0))
    wqkv_spec = pl.BlockSpec((1, d_head, D), lambda b, qi, h: (h, 0, 0))
    bqkv_spec = pl.BlockSpec((1, 1, d_head), lambda b, qi, h: (h, 0, 0))
    wo_spec = pl.BlockSpec((D, D), lambda b, qi, h: (0, 0))
    bo_spec = pl.BlockSpec((1, D), lambda b, qi, h: (0, 0))

    inputs = [Q, K, V]
    in_specs = [act_q_spec, act_kv_spec, act_kv_spec]
    if has_mask:
        mask_b = jnp.broadcast_to(mask, (B, 1, Sq, Sk))
        bias = jnp.where(mask_b == 0, -1e9, 0.0).astype(f32)  # additive bias, once
        inputs.append(bias)
        in_specs.append(
            pl.BlockSpec((1, 1, block_q, Sk), lambda b, qi, h: (b, 0, qi, 0)))
    inputs += [wq_h, bq_h, wk_h, bk_h, wv_h, bv_h, wo, bo_2]
    in_specs += [wqkv_spec, bqkv_spec, wqkv_spec, bqkv_spec,
                 wqkv_spec, bqkv_spec, wo_spec, bo_spec]

    out_shape = [jax.ShapeDtypeStruct((B, Sq, D), out_dtype)]
    out_specs = [pl.BlockSpec((1, block_q, D), lambda b, qi, h: (b, qi, 0))]
    if return_attn:
        out_shape.append(jax.ShapeDtypeStruct((B, num_heads, Sq, Sk), f32))
        out_specs.append(
            pl.BlockSpec((1, 1, block_q, Sk), lambda b, qi, h: (b, h, qi, 0)))

    kernel = _make_mha_kernel(num_heads, d_head, has_mask, return_attn)

    outs = pl.pallas_call(
        kernel,
        out_shape=tuple(out_shape),
        grid_spec=pltpu.PrefetchScalarGridSpec(
            num_scalar_prefetch=0,
            grid=(B, n_q, num_heads),
            in_specs=in_specs,
            out_specs=tuple(out_specs),
            scratch_shapes=[pltpu.VMEM((num_heads, block_q, d_head), f32)],
        ),
        compiler_params=pltpu.CompilerParams(
            dimension_semantics=("parallel", "parallel", "arbitrary"),
            vmem_limit_bytes=32 * 1024 * 1024),
    )(*inputs)

    if return_attn:
        out, attn = outs
        return out, attn
    (out,) = outs
    return out


def _reference(Q, K, V, params, num_heads, mask=None):
    """Pure-JAX reference mirroring the PyTorch forward pass exactly."""
    wq, bq, wk, bk, wv, bv, wo, bo = params
    B, Sq, D = Q.shape
    Sk = K.shape[1]
    dh = D // num_heads

    def lin(x, w, b):
        return x @ w.T + b

    def split(x, S):
        return x.reshape(B, S, num_heads, dh).transpose(0, 2, 1, 3)

    q = split(lin(Q, wq, bq), Sq)
    k = split(lin(K, wk, bk), Sk)
    v = split(lin(V, wv, bv), Sk)
    scores = jnp.einsum("bhqd,bhkd->bhqk", q, k) / math.sqrt(dh)
    if mask is not None:
        scores = jnp.where(mask == 0, -1e9, scores)
    w = jax.nn.softmax(scores, axis=-1)
    o = jnp.einsum("bhqk,bhkd->bhqd", w, v)
    o = o.transpose(0, 2, 1, 3).reshape(B, Sq, D)
    return lin(o, wo, bo), w


if __name__ == "__main__":
    B, S, D, H = 2, 8, 32, 4   # batch, seq (query == index size), d_model, heads

    key = jax.random.PRNGKey(0)
    keys = jax.random.split(key, 12)
    bound = 1.0 / math.sqrt(D)   # PyTorch nn.Linear default init range
    params = (
        jax.random.uniform(keys[0], (D, D), jnp.float32, -bound, bound),  # W_q
        jax.random.uniform(keys[1], (D,), jnp.float32, -bound, bound),    # b_q
        jax.random.uniform(keys[2], (D, D), jnp.float32, -bound, bound),  # W_k
        jax.random.uniform(keys[3], (D,), jnp.float32, -bound, bound),    # b_k
        jax.random.uniform(keys[4], (D, D), jnp.float32, -bound, bound),  # W_v
        jax.random.uniform(keys[5], (D,), jnp.float32, -bound, bound),    # b_v
        jax.random.uniform(keys[6], (D, D), jnp.float32, -bound, bound),  # W_o
        jax.random.uniform(keys[7], (D,), jnp.float32, -bound, bound),    # b_o
    )
    Q = jax.random.normal(keys[8], (B, S, D), jnp.float32)
    K = jax.random.normal(keys[9], (B, S, D), jnp.float32)
    V = jax.random.normal(keys[10], (B, S, D), jnp.float32)

    # Tolerance accounts for the approximate EUP reciprocal used for the softmax
    # normalization (vs the reference's exact divide).
    TOL = dict(rtol=1e-2, atol=1e-2)

    # 1) No mask (module default): specialized kernel with no mask operand at all.
    out, attn = multi_head_attention(Q, K, V, params, H, mask=None)
    jax.block_until_ready((out, attn))
    out_ref, attn_ref = _reference(Q, K, V, params, H, mask=None)
    np.testing.assert_allclose(np.asarray(out), np.asarray(out_ref), **TOL)
    np.testing.assert_allclose(np.asarray(attn), np.asarray(attn_ref), **TOL)
    assert out.shape == (B, S, D) and attn.shape == (B, H, S, S)

    # 2) Padding mask path (batch 1 masks out the last 3 keys), (B,1,1,Sk) mask.
    lengths = jnp.array([S, S - 3])
    mask = (jnp.arange(S)[None, None, None, :]
            < lengths[:, None, None, None]).astype(jnp.float32)
    out_m, attn_m = multi_head_attention(Q, K, V, params, H, mask=mask)
    jax.block_until_ready((out_m, attn_m))
    out_m_ref, attn_m_ref = _reference(Q, K, V, params, H, mask=mask)
    np.testing.assert_allclose(np.asarray(out_m), np.asarray(out_m_ref), **TOL)
    np.testing.assert_allclose(np.asarray(attn_m), np.asarray(attn_m_ref), **TOL)

    # 3) Fast path: no attention-weight HBM writeback + bf16 MXU compute.
    out_fast = multi_head_attention(Q, K, V, params, H, mask=None,
                                    return_attn=False,
                                    compute_dtype=jnp.bfloat16)
    jax.block_until_ready(out_fast)
    np.testing.assert_allclose(np.asarray(out_fast), np.asarray(out_ref),
                               rtol=5e-2, atol=5e-2)

    print("KERNEL_OK")
</pallas_src>

<mosaic_0001>
module attributes {stable_mosaic.version = 11 : i64} {
  func.func @kernel(%arg0: i32, %arg1: i32, %arg2: i32, %arg3: memref<1x8x32xf32, #tpu.memory_space<vmem>>, %arg4: memref<1x8x32xf32, #tpu.memory_space<vmem>>, %arg5: memref<1x8x32xf32, #tpu.memory_space<vmem>>, %arg6: memref<1x8x32xf32, #tpu.memory_space<vmem>>, %arg7: memref<1x1x8xf32, #tpu.memory_space<vmem>>, %arg8: memref<1x8x32xf32, #tpu.memory_space<vmem>>, %arg9: memref<1x1x8xf32, #tpu.memory_space<vmem>>, %arg10: memref<1x8x32xf32, #tpu.memory_space<vmem>>, %arg11: memref<1x1x8xf32, #tpu.memory_space<vmem>>, %arg12: memref<32x32xf32, #tpu.memory_space<vmem>>, %arg13: memref<1x32xf32, #tpu.memory_space<vmem>>, %arg14: memref<1x8x32xf32, #tpu.memory_space<vmem>>, %arg15: memref<1x1x8x8xf32, #tpu.memory_space<vmem>>, %arg16: memref<4x8x8xf32, #tpu.memory_space<vmem>>) attributes {dimension_semantics = [#tpu.dimension_semantics<parallel>, #tpu.dimension_semantics<parallel>, #tpu.dimension_semantics<arbitrary>], iteration_bounds = array<i64: 2, 1, 4>, scalar_prefetch = 0 : i64, scratch_operands = 1 : i64, tpu.core_type = #tpu.core_type<tc>, window_params = [{transform_indices = @transform_0, window_bounds = array<i64: 1, 8, 32>}, {transform_indices = @transform_1, window_bounds = array<i64: 1, 8, 32>}, {transform_indices = @transform_2, window_bounds = array<i64: 1, 8, 32>}, {transform_indices = @transform_3, window_bounds = array<i64: 1, 8, 32>}, {transform_indices = @transform_4, window_bounds = array<i64: 1, 1, 8>}, {transform_indices = @transform_5, window_bounds = array<i64: 1, 8, 32>}, {transform_indices = @transform_6, window_bounds = array<i64: 1, 1, 8>}, {transform_indices = @transform_7, window_bounds = array<i64: 1, 8, 32>}, {transform_indices = @transform_8, window_bounds = array<i64: 1, 1, 8>}, {pipeline_mode = #tpu.pipeline_mode<synchronous>, transform_indices = @transform_9, window_bounds = array<i64: 32, 32>}, {pipeline_mode = #tpu.pipeline_mode<synchronous>, transform_indices = @transform_10, window_bounds = array<i64: 1, 32>}, {transform_indices = @transform_11, window_bounds = array<i64: 1, 8, 32>}, {transform_indices = @transform_12, window_bounds = array<i64: 1, 1, 8, 8>}]} {
    %c0 = arith.constant 0 : index
    %c0_0 = arith.constant 0 : index
    %c0_1 = arith.constant 0 : index
    %0 = vector.load %arg3[%c0, %c0_0, %c0_1] : memref<1x8x32xf32, #tpu.memory_space<vmem>>, vector<1x8x32xf32>
    %1 = vector.shape_cast %0 : vector<1x8x32xf32> to vector<8x32xf32>
    %c0_2 = arith.constant 0 : index
    %c0_3 = arith.constant 0 : index
    %c0_4 = arith.constant 0 : index
    %2 = vector.load %arg4[%c0_2, %c0_3, %c0_4] : memref<1x8x32xf32, #tpu.memory_space<vmem>>, vector<1x8x32xf32>
    %3 = vector.shape_cast %2 : vector<1x8x32xf32> to vector<8x32xf32>
    %c0_5 = arith.constant 0 : index
    %c0_6 = arith.constant 0 : index
    %c0_7 = arith.constant 0 : index
    %4 = vector.load %arg5[%c0_5, %c0_6, %c0_7] : memref<1x8x32xf32, #tpu.memory_space<vmem>>, vector<1x8x32xf32>
    %5 = vector.shape_cast %4 : vector<1x8x32xf32> to vector<8x32xf32>
    %c0_8 = arith.constant 0 : index
    %c0_9 = arith.constant 0 : index
    %c0_10 = arith.constant 0 : index
    %6 = vector.load %arg6[%c0_8, %c0_9, %c0_10] : memref<1x8x32xf32, #tpu.memory_space<vmem>>, vector<1x8x32xf32>
    %7 = vector.shape_cast %6 : vector<1x8x32xf32> to vector<8x32xf32>
    %cst = arith.constant dense<0.000000e+00> : vector<8x8xf32>
    %8 = tpu.matmul %1, %7, %cst {dimension_numbers = #tpu.dot_dimension_numbers<[1], [1], [0], [0], [0, 0, 1, 0], [], []>} : vector<8x32xf32>, vector<8x32xf32>, vector<8x8xf32> -> vector<8x8xf32>
    %c0_11 = arith.constant 0 : index
    %c0_12 = arith.constant 0 : index
    %c0_13 = arith.constant 0 : index
    %9 = vector.load %arg7[%c0_11, %c0_12, %c0_13] : memref<1x1x8xf32, #tpu.memory_space<vmem>>, vector<1x1x8xf32>
    %10 = vector.shape_cast %9 : vector<1x1x8xf32> to vector<1x8xf32>
    %11 = vector.broadcast %10 : vector<1x8xf32> to vector<8x8xf32>
    %12 = arith.addf %8, %11 : vector<8x8xf32>
    %cst_14 = arith.constant 0.353553385 : f32
    %13 = vector.broadcast %cst_14 : f32 to vector<8x8xf32>
    %14 = arith.mulf %12, %13 : vector<8x8xf32>
    %c0_15 = arith.constant 0 : index
    %c0_16 = arith.constant 0 : index
    %c0_17 = arith.constant 0 : index
    %15 = vector.load %arg8[%c0_15, %c0_16, %c0_17] : memref<1x8x32xf32, #tpu.memory_space<vmem>>, vector<1x8x32xf32>
    %16 = vector.shape_cast %15 : vector<1x8x32xf32> to vector<8x32xf32>
    %cst_18 = arith.constant dense<0.000000e+00> : vector<8x8xf32>
    %17 = tpu.matmul %3, %16, %cst_18 {dimension_numbers = #tpu.dot_dimension_numbers<[1], [1], [0], [0], [0, 0, 1, 0], [], []>} : vector<8x32xf32>, vector<8x32xf32>, vector<8x8xf32> -> vector<8x8xf32>
    %c0_19 = arith.constant 0 : index
    %c0_20 = arith.constant 0 : index
    %c0_21 = arith.constant 0 : index
    %18 = vector.load %arg9[%c0_19, %c0_20, %c0_21] : memref<1x1x8xf32, #tpu.memory_space<vmem>>, vector<1x1x8xf32>
    %19 = vector.shape_cast %18 : vector<1x1x8xf32> to vector<1x8xf32>
    %20 = vector.broadcast %19 : vector<1x8xf32> to vector<8x8xf32>
    %21 = arith.addf %17, %20 : vector<8x8xf32>
    %c0_22 = arith.constant 0 : index
    %c0_23 = arith.constant 0 : index
    %c0_24 = arith.constant 0 : index
    %22 = vector.load %arg10[%c0_22, %c0_23, %c0_24] : memref<1x8x32xf32, #tpu.memory_space<vmem>>, vector<1x8x32xf32>
    %23 = vector.shape_cast %22 : vector<1x8x32xf32> to vector<8x32xf32>
    %cst_25 = arith.constant dense<0.000000e+00> : vector<8x8xf32>
    %24 = tpu.matmul %5, %23, %cst_25 {dimension_numbers = #tpu.dot_dimension_numbers<[1], [1], [0], [0], [0, 0, 1, 0], [], []>} : vector<8x32xf32>, vector<8x32xf32>, vector<8x8xf32> -> vector<8x8xf32>
    %c0_26 = arith.constant 0 : index
    %c0_27 = arith.constant 0 : index
    %c0_28 = arith.constant 0 : index
    %25 = vector.load %arg11[%c0_26, %c0_27, %c0_28] : memref<1x1x8xf32, #tpu.memory_space<vmem>>, vector<1x1x8xf32>
    %26 = vector.shape_cast %25 : vector<1x1x8xf32> to vector<1x8xf32>
    %27 = vector.broadcast %26 : vector<1x8xf32> to vector<8x8xf32>
    %28 = arith.addf %24, %27 : vector<8x8xf32>
    %cst_29 = arith.constant dense<0.000000e+00> : vector<8x8xf32>
    %29 = tpu.matmul %14, %21, %cst_29 {dimension_numbers = #tpu.dot_dimension_numbers<[1], [1], [0], [0], [0, 0, 1, 0], [], []>} : vector<8x8xf32>, vector<8x8xf32>, vector<8x8xf32> -> vector<8x8xf32>
    %cst_30 = arith.constant dense<0xFF800000> : vector<8xf32>
    %30 = vector.multi_reduction <maximumf>, %29, %cst_30 [1] : vector<8x8xf32> to vector<8xf32>
    %31 = vector.shape_cast %30 : vector<8xf32> to vector<8x1xf32>
    %32 = vector.broadcast %31 : vector<8x1xf32> to vector<8x8xf32>
    %33 = arith.subf %29, %32 : vector<8x8xf32>
    %34 = math.exp %33 : vector<8x8xf32>
    %cst_31 = arith.constant dense<0.000000e+00> : vector<8xf32>
    %35 = vector.multi_reduction <add>, %34, %cst_31 [1] : vector<8x8xf32> to vector<8xf32>
    %36 = vector.shape_cast %35 : vector<8xf32> to vector<8x1xf32>
    %37 = tpu.reciprocal %36 {approx = true} : vector<8x1xf32> -> vector<8x1xf32>
    %38 = vector.broadcast %37 : vector<8x1xf32> to vector<8x8xf32>
    %39 = arith.mulf %34, %38 : vector<8x8xf32>
    %c0_32 = arith.constant 0 : index
    %c0_33 = arith.constant 0 : index
    %c0_34 = arith.constant 0 : index
    %c0_35 = arith.constant 0 : index
    %40 = vector.load %arg15[%c0_32, %c0_33, %c0_34, %c0_35] : memref<1x1x8x8xf32, #tpu.memory_space<vmem>>, vector<1x1x8x8xf32>
    %41 = vector.shape_cast %40 : vector<1x1x8x8xf32> to vector<8x8xf32>
    %42 = vector.shape_cast %39 : vector<8x8xf32> to vector<1x1x8x8xf32>
    tpu.vector_store %arg15[%c0_32, %c0_33, %c0_34, %c0_35], %42 {strides = array<i32>} : memref<1x1x8x8xf32, #tpu.memory_space<vmem>>, vector<1x1x8x8xf32>,
    %cst_36 = arith.constant dense<0.000000e+00> : vector<8x8xf32>
    %43 = tpu.matmul %39, %28, %cst_36 {dimension_numbers = #tpu.dot_dimension_numbers<[1], [0], [0], [1], [0, 0, 1, 1], [], []>} : vector<8x8xf32>, vector<8x8xf32>, vector<8x8xf32> -> vector<8x8xf32>
    %44 = arith.index_cast %arg2 : i32 to index
    %c0_37 = arith.constant 0 : index
    %c0_38 = arith.constant 0 : index
    %45 = vector.load %arg16[%44, %c0_37, %c0_38] : memref<4x8x8xf32, #tpu.memory_space<vmem>>, vector<1x8x8xf32>
    %46 = vector.shape_cast %45 : vector<1x8x8xf32> to vector<8x8xf32>
    %47 = vector.shape_cast %43 : vector<8x8xf32> to vector<1x8x8xf32>
    tpu.vector_store %arg16[%44, %c0_37, %c0_38], %47 {strides = array<i32>} : memref<4x8x8xf32, #tpu.memory_space<vmem>>, vector<1x8x8xf32>,
    %c3_i32 = arith.constant 3 : i32
    %48 = arith.cmpi eq, %arg2, %c3_i32 : i32
    %49 = arith.extui %48 : i1 to i32
    %c0_i32 = arith.constant 0 : i32
    %50 = arith.cmpi ne, %49, %c0_i32 : i32
    scf.if %50 {
      %c0_39 = arith.constant 0 : index
      %c0_40 = arith.constant 0 : index
      %c0_41 = arith.constant 0 : index
      %51 = vector.load %arg16[%c0_39, %c0_40, %c0_41] : memref<4x8x8xf32, #tpu.memory_space<vmem>>, vector<1x8x8xf32>
      %52 = vector.shape_cast %51 : vector<1x8x8xf32> to vector<8x8xf32>
      %c1 = arith.constant 1 : index
      %c0_42 = arith.constant 0 : index
      %c0_43 = arith.constant 0 : index
      %53 = vector.load %arg16[%c1, %c0_42, %c0_43] : memref<4x8x8xf32, #tpu.memory_space<vmem>>, vector<1x8x8xf32>
      %54 = vector.shape_cast %53 : vector<1x8x8xf32> to vector<8x8xf32>
      %c2 = arith.constant 2 : index
      %c0_44 = arith.constant 0 : index
      %c0_45 = arith.constant 0 : index
      %55 = vector.load %arg16[%c2, %c0_44, %c0_45] : memref<4x8x8xf32, #tpu.memory_space<vmem>>, vector<1x8x8xf32>
      %56 = vector.shape_cast %55 : vector<1x8x8xf32> to vector<8x8xf32>
      %c3 = arith.constant 3 : index
      %c0_46 = arith.constant 0 : index
      %c0_47 = arith.constant 0 : index
      %57 = vector.load %arg16[%c3, %c0_46, %c0_47] : memref<4x8x8xf32, #tpu.memory_space<vmem>>, vector<1x8x8xf32>
      %58 = vector.shape_cast %57 : vector<1x8x8xf32> to vector<8x8xf32>
      %59 = tpu.concatenate %52, %54, %56, %58 in 1 : vector<8x8xf32>, vector<8x8xf32>, vector<8x8xf32>, vector<8x8xf32> -> vector<8x32xf32>
      %c0_48 = arith.constant 0 : index
      %c0_49 = arith.constant 0 : index
      %60 = vector.load %arg12[%c0_48, %c0_49] : memref<32x32xf32, #tpu.memory_space<vmem>>, vector<32x32xf32>
      %cst_50 = arith.constant dense<0.000000e+00> : vector<8x32xf32>
      %61 = tpu.matmul %59, %60, %cst_50 {dimension_numbers = #tpu.dot_dimension_numbers<[1], [1], [0], [0], [0, 0, 1, 0], [], []>} : vector<8x32xf32>, vector<32x32xf32>, vector<8x32xf32> -> vector<8x32xf32>
      %c0_51 = arith.constant 0 : index
      %c0_52 = arith.constant 0 : index
      %62 = vector.load %arg13[%c0_51, %c0_52] : memref<1x32xf32, #tpu.memory_space<vmem>>, vector<1x32xf32>
      %63 = vector.broadcast %62 : vector<1x32xf32> to vector<8x32xf32>
      %64 = arith.addf %61, %63 : vector<8x32xf32>
      %c0_53 = arith.constant 0 : index
      %c0_54 = arith.constant 0 : index
      %c0_55 = arith.constant 0 : index
      %65 = vector.load %arg14[%c0_53, %c0_54, %c0_55] : memref<1x8x32xf32, #tpu.memory_space<vmem>>, vector<1x8x32xf32>
      %66 = vector.shape_cast %65 : vector<1x8x32xf32> to vector<8x32xf32>
      %67 = vector.shape_cast %64 : vector<8x32xf32> to vector<1x8x32xf32>
      tpu.vector_store %arg14[%c0_53, %c0_54, %c0_55], %67 {strides = array<i32>} : memref<1x8x32xf32, #tpu.memory_space<vmem>>, vector<1x8x32xf32>,
    } else {
    }
    return
  }
  func.func @transform_0(%arg0: i32, %arg1: i32, %arg2: i32) -> (i32, i32, i32) {
    %c0_i32 = arith.constant 0 : i32
    %c0_i32_0 = arith.constant 0 : i32
    return %arg0, %arg1, %c0_i32 : i32, i32, i32
  }
  func.func @transform_1(%arg0: i32, %arg1: i32, %arg2: i32) -> (i32, i32, i32) {
    %c0_i32 = arith.constant 0 : i32
    %c0_i32_0 = arith.constant 0 : i32
    %c0_i32_1 = arith.constant 0 : i32
    return %arg0, %c0_i32, %c0_i32_0 : i32, i32, i32
  }
  func.func @transform_2(%arg0: i32, %arg1: i32, %arg2: i32) -> (i32, i32, i32) {
    %c0_i32 = arith.constant 0 : i32
    %c0_i32_0 = arith.constant 0 : i32
    %c0_i32_1 = arith.constant 0 : i32
    return %arg0, %c0_i32, %c0_i32_0 : i32, i32, i32
  }
  func.func @transform_3(%arg0: i32, %arg1: i32, %arg2: i32) -> (i32, i32, i32) {
    %c0_i32 = arith.constant 0 : i32
    %c0_i32_0 = arith.constant 0 : i32
    %c0_i32_1 = arith.constant 0 : i32
    return %arg2, %c0_i32, %c0_i32_0 : i32, i32, i32
  }
  func.func @transform_4(%arg0: i32, %arg1: i32, %arg2: i32) -> (i32, i32, i32) {
    %c0_i32 = arith.constant 0 : i32
    %c0_i32_0 = arith.constant 0 : i32
    %c0_i32_1 = arith.constant 0 : i32
    return %arg2, %c0_i32, %c0_i32_0 : i32, i32, i32
  }
  func.func @transform_5(%arg0: i32, %arg1: i32, %arg2: i32) -> (i32, i32, i32) {
    %c0_i32 = arith.constant 0 : i32
    %c0_i32_0 = arith.constant 0 : i32
    %c0_i32_1 = arith.constant 0 : i32
    return %arg2, %c0_i32, %c0_i32_0 : i32, i32, i32
  }
  func.func @transform_6(%arg0: i32, %arg1: i32, %arg2: i32) -> (i32, i32, i32) {
    %c0_i32 = arith.constant 0 : i32
    %c0_i32_0 = arith.constant 0 : i32
    %c0_i32_1 = arith.constant 0 : i32
    return %arg2, %c0_i32, %c0_i32_0 : i32, i32, i32
  }
  func.func @transform_7(%arg0: i32, %arg1: i32, %arg2: i32) -> (i32, i32, i32) {
    %c0_i32 = arith.constant 0 : i32
    %c0_i32_0 = arith.constant 0 : i32
    %c0_i32_1 = arith.constant 0 : i32
    return %arg2, %c0_i32, %c0_i32_0 : i32, i32, i32
  }
  func.func @transform_8(%arg0: i32, %arg1: i32, %arg2: i32) -> (i32, i32, i32) {
    %c0_i32 = arith.constant 0 : i32
    %c0_i32_0 = arith.constant 0 : i32
    %c0_i32_1 = arith.constant 0 : i32
    return %arg2, %c0_i32, %c0_i32_0 : i32, i32, i32
  }
  func.func @transform_9(%arg0: i32, %arg1: i32, %arg2: i32) -> (i32, i32) {
    %c0_i32 = arith.constant 0 : i32
    %c0_i32_0 = arith.constant 0 : i32
    %c0_i32_1 = arith.constant 0 : i32
    return %c0_i32, %c0_i32_0 : i32, i32
  }
  func.func @transform_10(%arg0: i32, %arg1: i32, %arg2: i32) -> (i32, i32) {
    %c0_i32 = arith.constant 0 : i32
    %c0_i32_0 = arith.constant 0 : i32
    %c0_i32_1 = arith.constant 0 : i32
    return %c0_i32, %c0_i32_0 : i32, i32
  }
  func.func @transform_11(%arg0: i32, %arg1: i32, %arg2: i32) -> (i32, i32, i32) {
    %c0_i32 = arith.constant 0 : i32
    %c0_i32_0 = arith.constant 0 : i32
    return %arg0, %arg1, %c0_i32 : i32, i32, i32
  }
  func.func @transform_12(%arg0: i32, %arg1: i32, %arg2: i32) -> (i32, i32, i32, i32) {
    %c0_i32 = arith.constant 0 : i32
    %c0_i32_0 = arith.constant 0 : i32
    return %arg0, %arg2, %arg1, %c0_i32 : i32, i32, i32, i32
  }
}

</mosaic_0001>

<llo_original>
// kernel: tpu_custom_call.1
$region0: #{tpu_custom_call.1}
  #allocation0 [shape = 'u32[]', space=smem, size = 0x4, offset = 0x4, fixed_abs, tag = 'smem constant byte address 0x4 - core index']
  #allocation1 [shape = 'u32[144,128]{1,0:T(1,128)}', space=vmem, size = 0x12000, scoped, tag = 'internal scratch']
  #allocation2 [shape = 'f32[4,8,8]{2,1,0:T(8,128)}', space=vmem, size = 0x4000, scoped, tag = 'scratch operand']
  %s0 = inlined_call_operand.hbm [shape: f32[2,8,32], index: 0, kind: input, shape index: {}]
  %s1 = inlined_call_operand.hbm [shape: f32[2,8,32], index: 1, kind: input, shape index: {}]
  %s2 = inlined_call_operand.hbm [shape: f32[2,8,32], index: 2, kind: input, shape index: {}]
  %s3 = inlined_call_operand.hbm [shape: f32[4,8,32], index: 3, kind: input, shape index: {}]
  %s4 = inlined_call_operand.hbm [shape: f32[4,1,8], index: 4, kind: input, shape index: {}]
  %s5 = inlined_call_operand.hbm [shape: f32[4,8,32], index: 5, kind: input, shape index: {}]
  %s6 = inlined_call_operand.hbm [shape: f32[4,1,8], index: 6, kind: input, shape index: {}]
  %s7 = inlined_call_operand.hbm [shape: f32[4,8,32], index: 7, kind: input, shape index: {}]
  %s8 = inlined_call_operand.hbm [shape: f32[4,1,8], index: 8, kind: input, shape index: {}]
  %s9 = inlined_call_operand.vmem [shape: f32[32,32], index: 9, kind: input, shape index: {}]
  %s10 = inlined_call_operand.vmem [shape: f32[1,32], index: 10, kind: input, shape index: {}]
  %s11 = inlined_call_operand.hbm [shape: f32[2,8,32], index: 11, kind: output, shape index: {0}]
  %s12 = inlined_call_operand.hbm [shape: f32[2,4,8,8], index: 12, kind: output, shape index: {1}]
  %13 = xla_tuple %s11, %s12
  %s14 = sld [smem:[#allocation0]]
  $region125: #{tpu_custom_call.1} parent=0
    _
  %s16 = ssub.s32 1, %s14
  %s17 = scalar_select 0, %s16, %s14
  $region1: #{tpu_custom_call.1} parent=0
    #allocation3 [shape = 'u8[8192]{0}', space=vmem, size = 0x2000, scoped, tag = 'input window, operand 0']
    #allocation4 [shape = 's32[2]{0}', space=sflag, size = 0x8, scoped, tag = 'scoped memory for tpu_custom_call.1']
    #allocation5 [shape = 's32[2]{0}', space=sflag, size = 0x8, scoped, tag = 'scoped memory for tpu_custom_call.1']
    #allocation6 [shape = 'u8[8192]{0}', space=vmem, size = 0x2000, scoped, tag = 'input window, operand 1']
    #allocation7 [shape = 's32[2]{0}', space=sflag, size = 0x8, scoped, tag = 'scoped memory for tpu_custom_call.1']
    #allocation8 [shape = 'u8[8192]{0}', space=vmem, size = 0x2000, scoped, tag = 'input window, operand 2']
    #allocation9 [shape = 'u8[8192]{0}', space=vmem, size = 0x2000, scoped, tag = 'input window, operand 3']
    #allocation10 [shape = 's32[2]{0}', space=sflag, size = 0x8, scoped, tag = 'scoped memory for tpu_custom_call.1']
    #allocation11 [shape = 'u8[1024]{0}', space=vmem, size = 0x400, scoped, tag = 'input window, operand 4']
    #allocation12 [shape = 'u8[8192]{0}', space=vmem, size = 0x2000, scoped, tag = 'input window, operand 5']
    #allocation13 [shape = 's32[2]{0}', space=sflag, size = 0x8, scoped, tag = 'scoped memory for tpu_custom_call.1']
    #allocation14 [shape = 'u8[1024]{0}', space=vmem, size = 0x400, scoped, tag = 'input window, operand 6']
    #allocation15 [shape = 'u8[8192]{0}', space=vmem, size = 0x2000, scoped, tag = 'input window, operand 7']
    #allocation16 [shape = 's32[2]{0}', space=sflag, size = 0x8, scoped, tag = 'scoped memory for tpu_custom_call.1']
    #allocation17 [shape = 'u8[1024]{0}', space=vmem, size = 0x400, scoped, tag = 'input window, operand 8']
    #allocation18 [shape = 'u8[8192]{0}', space=vmem, size = 0x2000, scoped, tag = 'output window, operand 0']
    #allocation19 [shape = 'u8[8192]{0}', space=vmem, size = 0x2000, scoped, tag = 'output window, operand 1']
    #allocation20 [shape = 's32[2]{0}', space=sflag, size = 0x8, scoped, tag = 'scoped memory for tpu_custom_call.1']
    %18 = vsyncpa [#allocation4], 0
    %s19 = scalar_lea.sflag [#allocation4], 1
    %20 = vsyncpa %s19, 0
    %21 = vsyncpa [#allocation7], 0
    %s22 = scalar_lea.sflag [#allocation7], 1
    %23 = vsyncpa %s22, 0
    %24 = vsyncpa [#allocation10], 0
    %s25 = scalar_lea.sflag [#allocation10], 1
    %26 = vsyncpa %s25, 0
    %27 = vsyncpa [#allocation13], 0
    %s28 = scalar_lea.sflag [#allocation13], 1
    %29 = vsyncpa %s28, 0
    %30 = vsyncpa [#allocation16], 0
    %s31 = scalar_lea.sflag [#allocation16], 1
    %32 = vsyncpa %s31, 0
    %33 = vsyncpa [#allocation5], 0
    %s34 = scalar_lea.sflag [#allocation5], 1
    %35 = vsyncpa %s34, 0
    %36 = vsyncpa [#allocation20], 0
    %s37 = scalar_lea.sflag [#allocation20], 1
    %38 = vsyncpa %s37, 0
    loop: start=0, step=1, limit=10
    $region2: #{tpu_custom_call.1} parent=1 // loop_pre_header
      _
    $region3: #{tpu_custom_call.1} parent=1 // loop_header
      %s40 = sphi 0, %s44
      %p41 = scmp.ge.s32.totalorder %s40, 10
      %s47 = sphi 0, %s66
      %s48 = sphi 0, %s62
      %s49 = sphi 0, %s58
      %s50 = sphi 0, %s47
      %s51 = sphi 0, %s48
      %s52 = sphi 0, %s49
      %s53 = sphi 0, %s50
      %s54 = sphi 0, %s51
      %s55 = sphi 0, %s52
      %s71 = sphi 0, %s73
      %s74 = sphi 0, %s71
      %s75 = sphi 0, %s74
      %s91 = sphi 0, %s75
      %s97 = sphi 0, %s99
      %s100 = sphi 0, %s97
      %s101 = sphi 0, %s100
      %s117 = sphi 0, %s101
      %s123 = sphi 0, %s125
      %s126 = sphi 0, %s123
      %s127 = sphi 0, %s126
      %s143 = sphi 0, %s127
      %s149 = sphi 0, %s151
      %s152 = sphi 0, %s149
      %s153 = sphi 0, %s152
      %s169 = sphi 0, %s153
      %s175 = sphi 0, %s177
      %s178 = sphi 0, %s175
      %s179 = sphi 0, %s178
      %s195 = sphi 0, %s179
      %s201 = sphi 0, %s203
      %s204 = sphi 0, %s201
      %s205 = sphi 0, %s204
      %s221 = sphi 0, %s205
      %s227 = sphi 0, %s229
      %s230 = sphi 0, %s227
      %s231 = sphi 0, %s230
      %s247 = sphi 0, %s231
      %s253 = sphi 0, %s255
      %s256 = sphi 0, %s253
      %s257 = sphi 0, %s256
      %s273 = sphi 0, %s257
      %s279 = sphi 0, %s281
      %s282 = sphi 0, %s279
      %s283 = sphi 0, %s282
      %s299 = sphi 0, %s283
      %s303 = sphi 0, %s303
      %s305 = sphi 0, %s303
      %s306 = sphi 0, %s305
      %s320 = sphi 0, %s306
      %s324 = sphi 0, %s324
      %s326 = sphi 0, %s324
      %s327 = sphi 0, %s326
      %s341 = sphi 0, %s327
      %s349 = sphi 0, %s351
      %s352 = sphi 0, %s349
      %s353 = sphi 0, %s352
      %s369 = sphi 0, %s353
      %s379 = sphi 0, %s381
      %s382 = sphi 0, %s379
      %s383 = sphi 0, %s382
      %s399 = sphi 0, %s383
    $region4: #{tpu_custom_call.1} parent=1 // loop_header_branch
      %43 = sbr.rel (%p41) target = $region8
    $region5: #{tpu_custom_call.1} parent=1 // loop_body
      %s45 = ssub.s32 %s40, 1
      %s46 = ssub.s32 %s40, 2
      %s56 = sadd.s32 1, %s49
      %p57 = scmp.ge.s32.totalorder %s56, 4
      %s58 = scalar_select %p57, 0, %s56
      %s59 = sadd.s32 1, %s48
      %s60 = scalar_select %p57, %s59, %s48
      %p61 = scmp.ge.s32.totalorder %s60, 1
      %s62 = scalar_select %p61, 0, %s60
      %s63 = sadd.s32 1, %s47
      %s64 = scalar_select %p61, %s63, %s47
      %p65 = scmp.ge.s32.totalorder %s64, 2
      %s66 = scalar_select %p65, 0, %s64
      %s67 = ssub.s32 %s47, %s66
      %s68 = ssub.s32 %s48, %s62
      %s69 = sor.u32 %s67, %s68
      %p70 = scmp.eq.s32.totalorder %s69, 0
      %s72 = sadd.s32 %s71, 1
      %s73 = scalar_select %p70, %s71, %s72
      %p76 = pneg %p70
      %p77 = scmp.eq.s32.totalorder %s40, 7
      %p78 = por %p76, %p77
      %p79 = scmp.ne.s32.totalorder %s71, %s74
      %p80 = scmp.eq.s32.totalorder %s40, 0
      %p81 = por %p79, %p80
      %p82 = scmp.ne.s32.totalorder %s71, %s74
      %p83 = scmp.eq.s32.totalorder %s45, 7
      %p84 = por %p82, %p83
      %p85 = scmp.ne.s32.totalorder %s74, %s75
      %p86 = scmp.eq.s32.totalorder %s45, 0
      %p87 = por %p85, %p86
      %p88 = scmp.ne.s32.totalorder %s74, %s75
      %p89 = scmp.eq.s32.totalorder %s46, 7
      %p90 = por %p88, %p89
      %p92 = scmp.ne.s32.totalorder %s75, %s91
      %p93 = scmp.eq.s32.totalorder %s46, 0
      %p94 = por %p92, %p93
      %s95 = ssub.s32 %s47, %s66
      %p96 = scmp.eq.s32.totalorder %s95, 0
      %s98 = sadd.s32 %s97, 1
      %s99 = scalar_select %p96, %s97, %s98
      %p102 = pneg %p96
      %p103 = scmp.eq.s32.totalorder %s40, 7
      %p104 = por %p102, %p103
      %p105 = scmp.ne.s32.totalorder %s97, %s100
      %p106 = scmp.eq.s32.totalorder %s40, 0
      %p107 = por %p105, %p106
      %p108 = scmp.ne.s32.totalorder %s97, %s100
      %p109 = scmp.eq.s32.totalorder %s45, 7
      %p110 = por %p108, %p109
      %p111 = scmp.ne.s32.totalorder %s100, %s101
      %p112 = scmp.eq.s32.totalorder %s45, 0
      %p113 = por %p111, %p112
      %p114 = scmp.ne.s32.totalorder %s100, %s101
      %p115 = scmp.eq.s32.totalorder %s46, 7
      %p116 = por %p114, %p115
      %p118 = scmp.ne.s32.totalorder %s101, %s117
      %p119 = scmp.eq.s32.totalorder %s46, 0
      %p120 = por %p118, %p119
      %s121 = ssub.s32 %s47, %s66
      %p122 = scmp.eq.s32.totalorder %s121, 0
      %s124 = sadd.s32 %s123, 1
      %s125 = scalar_select %p122, %s123, %s124
      %p128 = pneg %p122
      %p129 = scmp.eq.s32.totalorder %s40, 7
      %p130 = por %p128, %p129
      %p131 = scmp.ne.s32.totalorder %s123, %s126
      %p132 = scmp.eq.s32.totalorder %s40, 0
      %p133 = por %p131, %p132
      %p134 = scmp.ne.s32.totalorder %s123, %s126
      %p135 = scmp.eq.s32.totalorder %s45, 7
      %p136 = por %p134, %p135
      %p137 = scmp.ne.s32.totalorder %s126, %s127
      %p138 = scmp.eq.s32.totalorder %s45, 0
      %p139 = por %p137, %p138
      %p140 = scmp.ne.s32.totalorder %s126, %s127
      %p141 = scmp.eq.s32.totalorder %s46, 7
      %p142 = por %p140, %p141
      %p144 = scmp.ne.s32.totalorder %s127, %s143
      %p145 = scmp.eq.s32.totalorder %s46, 0
      %p146 = por %p144, %p145
      %s147 = ssub.s32 %s49, %s58
      %p148 = scmp.eq.s32.totalorder %s147, 0
      %s150 = sadd.s32 %s149, 1
      %s151 = scalar_select %p148, %s149, %s150
      %p154 = pneg %p148
      %p155 = scmp.eq.s32.totalorder %s40, 7
      %p156 = por %p154, %p155
      %p157 = scmp.ne.s32.totalorder %s149, %s152
      %p158 = scmp.eq.s32.totalorder %s40, 0
      %p159 = por %p157, %p158
      %p160 = scmp.ne.s32.totalorder %s149, %s152
      %p161 = scmp.eq.s32.totalorder %s45, 7
      %p162 = por %p160, %p161
      %p163 = scmp.ne.s32.totalorder %s152, %s153
      %p164 = scmp.eq.s32.totalorder %s45, 0
      %p165 = por %p163, %p164
      %p166 = scmp.ne.s32.totalorder %s152, %s153
      %p167 = scmp.eq.s32.totalorder %s46, 7
      %p168 = por %p166, %p167
      %p170 = scmp.ne.s32.totalorder %s153, %s169
      %p171 = scmp.eq.s32.totalorder %s46, 0
      %p172 = por %p170, %p171
      %s173 = ssub.s32 %s49, %s58
      %p174 = scmp.eq.s32.totalorder %s173, 0
      %s176 = sadd.s32 %s175, 1
      %s177 = scalar_select %p174, %s175, %s176
      %p180 = pneg %p174
      %p181 = scmp.eq.s32.totalorder %s40, 7
      %p182 = por %p180, %p181
      %p183 = scmp.ne.s32.totalorder %s175, %s178
      %p184 = scmp.eq.s32.totalorder %s40, 0
      %p185 = por %p183, %p184
      %p186 = scmp.ne.s32.totalorder %s175, %s178
      %p187 = scmp.eq.s32.totalorder %s45, 7
      %p188 = por %p186, %p187
      %p189 = scmp.ne.s32.totalorder %s178, %s179
      %p190 = scmp.eq.s32.totalorder %s45, 0
      %p191 = por %p189, %p190
      %p192 = scmp.ne.s32.totalorder %s178, %s179
      %p193 = scmp.eq.s32.totalorder %s46, 7
      %p194 = por %p192, %p193
      %p196 = scmp.ne.s32.totalorder %s179, %s195
      %p197 = scmp.eq.s32.totalorder %s46, 0
      %p198 = por %p196, %p197
      %s199 = ssub.s32 %s49, %s58
      %p200 = scmp.eq.s32.totalorder %s199, 0
      %s202 = sadd.s32 %s201, 1
      %s203 = scalar_select %p200, %s201, %s202
      %p206 = pneg %p200
      %p207 = scmp.eq.s32.totalorder %s40, 7
      %p208 = por %p206, %p207
      %p209 = scmp.ne.s32.totalorder %s201, %s204
      %p210 = scmp.eq.s32.totalorder %s40, 0
      %p211 = por %p209, %p210
      %p212 = scmp.ne.s32.totalorder %s201, %s204
      %p213 = scmp.eq.s32.totalorder %s45, 7
      %p214 = por %p212, %p213
      %p215 = scmp.ne.s32.totalorder %s204, %s205
      %p216 = scmp.eq.s32.totalorder %s45, 0
      %p217 = por %p215, %p216
      %p218 = scmp.ne.s32.totalorder %s204, %s205
      %p219 = scmp.eq.s32.totalorder %s46, 7
      %p220 = por %p218, %p219
      %p222 = scmp.ne.s32.totalorder %s205, %s221
      %p223 = scmp.eq.s32.totalorder %s46, 0
      %p224 = por %p222, %p223
      %s225 = ssub.s32 %s49, %s58
      %p226 = scmp.eq.s32.totalorder %s225, 0
      %s228 = sadd.s32 %s227, 1
      %s229 = scalar_select %p226, %s227, %s228
      %p232 = pneg %p226
      %p233 = scmp.eq.s32.totalorder %s40, 7
      %p234 = por %p232, %p233
      %p235 = scmp.ne.s32.totalorder %s227, %s230
      %p236 = scmp.eq.s32.totalorder %s40, 0
      %p237 = por %p235, %p236
      %p238 = scmp.ne.s32.totalorder %s227, %s230
      %p239 = scmp.eq.s32.totalorder %s45, 7
      %p240 = por %p238, %p239
      %p241 = scmp.ne.s32.totalorder %s230, %s231
      %p242 = scmp.eq.s32.totalorder %s45, 0
      %p243 = por %p241, %p242
      %p244 = scmp.ne.s32.totalorder %s230, %s231
      %p245 = scmp.eq.s32.totalorder %s46, 7
      %p246 = por %p244, %p245
      %p248 = scmp.ne.s32.totalorder %s231, %s247
      %p249 = scmp.eq.s32.totalorder %s46, 0
      %p250 = por %p248, %p249
      %s251 = ssub.s32 %s49, %s58
      %p252 = scmp.eq.s32.totalorder %s251, 0
      %s254 = sadd.s32 %s253, 1
      %s255 = scalar_select %p252, %s253, %s254
      %p258 = pneg %p252
      %p259 = scmp.eq.s32.totalorder %s40, 7
      %p260 = por %p258, %p259
      %p261 = scmp.ne.s32.totalorder %s253, %s256
      %p262 = scmp.eq.s32.totalorder %s40, 0
      %p263 = por %p261, %p262
      %p264 = scmp.ne.s32.totalorder %s253, %s256
      %p265 = scmp.eq.s32.totalorder %s45, 7
      %p266 = por %p264, %p265
      %p267 = scmp.ne.s32.totalorder %s256, %s257
      %p268 = scmp.eq.s32.totalorder %s45, 0
      %p269 = por %p267, %p268
      %p270 = scmp.ne.s32.totalorder %s256, %s257
      %p271 = scmp.eq.s32.totalorder %s46, 7
      %p272 = por %p270, %p271
      %p274 = scmp.ne.s32.totalorder %s257, %s273
      %p275 = scmp.eq.s32.totalorder %s46, 0
      %p276 = por %p274, %p275
      %s277 = ssub.s32 %s49, %s58
      %p278 = scmp.eq.s32.totalorder %s277, 0
      %s280 = sadd.s32 %s279, 1
      %s281 = scalar_select %p278, %s279, %s280
      %p284 = pneg %p278
      %p285 = scmp.eq.s32.totalorder %s40, 7
      %p286 = por %p284, %p285
      %p287 = scmp.ne.s32.totalorder %s279, %s282
      %p288 = scmp.eq.s32.totalorder %s40, 0
      %p289 = por %p287, %p288
      %p290 = scmp.ne.s32.totalorder %s279, %s282
      %p291 = scmp.eq.s32.totalorder %s45, 7
      %p292 = por %p290, %p291
      %p293 = scmp.ne.s32.totalorder %s282, %s283
      %p294 = scmp.eq.s32.totalorder %s45, 0
      %p295 = por %p293, %p294
      %p296 = scmp.ne.s32.totalorder %s282, %s283
      %p297 = scmp.eq.s32.totalorder %s46, 7
      %p298 = por %p296, %p297
      %p300 = scmp.ne.s32.totalorder %s283, %s299
      %p301 = scmp.eq.s32.totalorder %s46, 0
      %p302 = por %p300, %p301
      %s304 = sadd.s32 %s303, 1
      %p307 = scmp.eq.s32.totalorder %s40, 7
      %p308 = scmp.ne.s32.totalorder %s303, %s305
      %p309 = scmp.eq.s32.totalorder %s40, 0
      %p310 = por %p308, %p309
      %p311 = scmp.ne.s32.totalorder %s303, %s305
      %p312 = scmp.eq.s32.totalorder %s45, 7
      %p313 = por %p311, %p312
      %p314 = scmp.ne.s32.totalorder %s305, %s306
      %p315 = scmp.eq.s32.totalorder %s45, 0
      %p316 = por %p314, %p315
      %p317 = scmp.ne.s32.totalorder %s305, %s306
      %p318 = scmp.eq.s32.totalorder %s46, 7
      %p319 = por %p317, %p318
      %p321 = scmp.ne.s32.totalorder %s306, %s320
      %p322 = scmp.eq.s32.totalorder %s46, 0
      %p323 = por %p321, %p322
      %s325 = sadd.s32 %s324, 1
      %p328 = scmp.eq.s32.totalorder %s40, 7
      %p329 = scmp.ne.s32.totalorder %s324, %s326
      %p330 = scmp.eq.s32.totalorder %s40, 0
      %p331 = por %p329, %p330
      %p332 = scmp.ne.s32.totalorder %s324, %s326
      %p333 = scmp.eq.s32.totalorder %s45, 7
      %p334 = por %p332, %p333
      %p335 = scmp.ne.s32.totalorder %s326, %s327
      %p336 = scmp.eq.s32.totalorder %s45, 0
      %p337 = por %p335, %p336
      %p338 = scmp.ne.s32.totalorder %s326, %s327
      %p339 = scmp.eq.s32.totalorder %s46, 7
      %p340 = por %p338, %p339
      %p342 = scmp.ne.s32.totalorder %s327, %s341
      %p343 = scmp.eq.s32.totalorder %s46, 0
      %p344 = por %p342, %p343
      %s345 = ssub.s32 %s47, %s66
      %s346 = ssub.s32 %s48, %s62
      %s347 = sor.u32 %s345, %s346
      %p348 = scmp.eq.s32.totalorder %s347, 0
      %s350 = sadd.s32 %s349, 1
      %s351 = scalar_select %p348, %s349, %s350
      %p354 = pneg %p348
      %p355 = scmp.eq.s32.totalorder %s40, 7
      %p356 = por %p354, %p355
      %p357 = scmp.ne.s32.totalorder %s349, %s352
      %p358 = scmp.eq.s32.totalorder %s40, 0
      %p359 = por %p357, %p358
      %p360 = scmp.ne.s32.totalorder %s349, %s352
      %p361 = scmp.eq.s32.totalorder %s45, 7
      %p362 = por %p360, %p361
      %p363 = scmp.ne.s32.totalorder %s352, %s353
      %p364 = scmp.eq.s32.totalorder %s45, 0
      %p365 = por %p363, %p364
      %p366 = scmp.ne.s32.totalorder %s352, %s353
      %p367 = scmp.eq.s32.totalorder %s46, 7
      %p368 = por %p366, %p367
      %p370 = scmp.ne.s32.totalorder %s353, %s369
      %p371 = scmp.eq.s32.totalorder %s46, 0
      %p372 = por %p370, %p371
      %s373 = ssub.s32 %s47, %s66
      %s374 = ssub.s32 %s49, %s58
      %s375 = sor.u32 %s373, %s374
      %s376 = ssub.s32 %s48, %s62
      %s377 = sor.u32 %s375, %s376
      %p378 = scmp.eq.s32.totalorder %s377, 0
      %s380 = sadd.s32 %s379, 1
      %s381 = scalar_select %p378, %s379, %s380
      %p384 = pneg %p378
      %p385 = scmp.eq.s32.totalorder %s40, 7
      %p386 = por %p384, %p385
      %p387 = scmp.ne.s32.totalorder %s379, %s382
      %p388 = scmp.eq.s32.totalorder %s40, 0
      %p389 = por %p387, %p388
      %p390 = scmp.ne.s32.totalorder %s379, %s382
      %p391 = scmp.eq.s32.totalorder %s45, 7
      %p392 = por %p390, %p391
      %p393 = scmp.ne.s32.totalorder %s382, %s383
      %p394 = scmp.eq.s32.totalorder %s45, 0
      %p395 = por %p393, %p394
      %p396 = scmp.ne.s32.totalorder %s382, %s383
      %p397 = scmp.eq.s32.totalorder %s46, 7
      %p398 = por %p396, %p397
      %p400 = scmp.ne.s32.totalorder %s383, %s399
      %p401 = scmp.eq.s32.totalorder %s46, 0
      %p402 = por %p400, %p401
      %p403 = scmp.le.s32.totalorder 1, %s40
      %p404 = scmp.lt.s32.totalorder %s40, 9
      %p405 = pnand %p403, %p404
      %p406 = pneg %p405
      // Predicated region
      $region9: #{tpu_custom_call.1} parent=5 // pred_check
        _
      $region10: #{tpu_custom_call.1} parent=5 // pred_check_branch
        %408 = sbr.rel (%p405) target = $region12
      $region11: #{tpu_custom_call.1} parent=5 // pred_region
        %s409 = ssub.s32 %s40, 1
        // Predicated region
        $region13: #{tpu_custom_call.1} parent=11 // pred_check
          %p410 = pneg %p316
        $region14: #{tpu_custom_call.1} parent=11 // pred_check_branch
          %412 = sbr.rel (%p410) target = $region16
        $region15: #{tpu_custom_call.1} parent=11 // pred_region
          _
        $region16: #{tpu_custom_call.1} parent=11 // pred_fallthru
          _
        // Predicated region
        $region17: #{tpu_custom_call.1} parent=11 // pred_check
          %p413 = pneg %p337
        $region18: #{tpu_custom_call.1} parent=11 // pred_check_branch
          %415 = sbr.rel (%p413) target = $region20
        $region19: #{tpu_custom_call.1} parent=11 // pred_region
          _
        $region20: #{tpu_custom_call.1} parent=11 // pred_fallthru
          _
      $region12: #{tpu_custom_call.1} parent=5 // pred_fallthru
        _
      %p416 = scmp.lt.s32.totalorder %s40, 8
      // Predicated region
      $region21: #{tpu_custom_call.1} parent=5 // pred_check
        %p417 = pneg %p416
      $region22: #{tpu_custom_call.1} parent=5 // pred_check_branch
        %419 = sbr.rel (%p417) target = $region24
      $region23: #{tpu_custom_call.1} parent=5 // pred_region
        // Predicated region
        $region25: #{tpu_custom_call.1} parent=23 // pred_check
          %p420 = pneg %p81
        $region26: #{tpu_custom_call.1} parent=23 // pred_check_branch
          %422 = sbr.rel (%p420) target = $region28
        $region27: #{tpu_custom_call.1} parent=23 // pred_region
          %s423 = sand.u32 %s71, 1
          %s424 = scalar_lea.sflag [#allocation4], %s423
          %s425 = sand.u32 %s71, 1
          %s426 = smul.addr %s425, 8
          %s427 = scalar_lea.vmem [#allocation3], %s426
          %s429 = ssub.s32 128, 128
          %430 = vsyncadd %s424, %s429
          %s431 = sadd.s32 %s48, %s47
          %s432 = smul.addr %s431, 128
          %s433 = scalar_lea.hbm %s0, %s432
          %s435 = sshll.u32 %s427, 4
          %s436 = int_to_ptr.vmem [resolvable:$true] %s435
          %438 = dma.hbm_to_vmem [thread:$0]  %s433, 128, %s436, %s424
        $region28: #{tpu_custom_call.1} parent=23 // pred_fallthru
          _
        // Predicated region
        $region29: #{tpu_custom_call.1} parent=23 // pred_check
          %p439 = pneg %p107
        $region30: #{tpu_custom_call.1} parent=23 // pred_check_branch
          %441 = sbr.rel (%p439) target = $region32
        $region31: #{tpu_custom_call.1} parent=23 // pred_region
          %s442 = sand.u32 %s40, 1
          %s443 = scalar_lea.sflag [#allocation7], %s442
          %s444 = sand.u32 %s97, 1
          %s445 = smul.addr %s444, 8
          %s446 = scalar_lea.vmem [#allocation6], %s445
          %s448 = ssub.s32 128, 128
          %449 = vsyncadd %s443, %s448
          %s450 = smul.addr %s47, 128
          %s451 = scalar_lea.hbm %s1, %s450
          %s453 = sshll.u32 %s446, 4
          %s454 = int_to_ptr.vmem [resolvable:$true] %s453
          %456 = dma.hbm_to_vmem [thread:$0]  %s451, 128, %s454, %s443
        $region32: #{tpu_custom_call.1} parent=23 // pred_fallthru
          _
        // Predicated region
        $region33: #{tpu_custom_call.1} parent=23 // pred_check
          %p457 = pneg %p133
        $region34: #{tpu_custom_call.1} parent=23 // pred_check_branch
          %459 = sbr.rel (%p457) target = $region36
        $region35: #{tpu_custom_call.1} parent=23 // pred_region
          %s460 = sand.u32 %s40, 1
          %s461 = scalar_lea.sflag [#allocation7], %s460
          %s462 = sand.u32 %s123, 1
          %s463 = smul.addr %s462, 8
          %s464 = scalar_lea.vmem [#allocation8], %s463
          %s466 = ssub.s32 128, 128
          %467 = vsyncadd %s461, %s466
          %s468 = smul.addr %s47, 128
          %s469 = scalar_lea.hbm %s2, %s468
          %s471 = sshll.u32 %s464, 4
          %s472 = int_to_ptr.vmem [resolvable:$true] %s471
          %474 = dma.hbm_to_vmem [thread:$0]  %s469, 128, %s472, %s461
        $region36: #{tpu_custom_call.1} parent=23 // pred_fallthru
          _
        // Predicated region
        $region37: #{tpu_custom_call.1} parent=23 // pred_check
          %p475 = pneg %p159
        $region38: #{tpu_custom_call.1} parent=23 // pred_check_branch
          %477 = sbr.rel (%p475) target = $region40
        $region39: #{tpu_custom_call.1} parent=23 // pred_region
          %s478 = sand.u32 %s40, 1
          %s479 = scalar_lea.sflag [#allocation10], %s478
          %s480 = sand.u32 %s149, 1
          %s481 = smul.addr %s480, 8
          %s482 = scalar_lea.vmem [#allocation9], %s481
          %s484 = ssub.s32 128, 128
          %485 = vsyncadd %s479, %s484
          %s486 = smul.addr %s49, 128
          %s487 = scalar_lea.hbm %s3, %s486
          %s489 = sshll.u32 %s482, 4
          %s490 = int_to_ptr.vmem [resolvable:$true] %s489
          %492 = dma.hbm_to_vmem [thread:$0]  %s487, 128, %s490, %s479
        $region40: #{tpu_custom_call.1} parent=23 // pred_fallthru
          _
        // Predicated region
        $region41: #{tpu_custom_call.1} parent=23 // pred_check
          %p493 = pneg %p185
        $region42: #{tpu_custom_call.1} parent=23 // pred_check_branch
          %495 = sbr.rel (%p493) target = $region44
        $region43: #{tpu_custom_call.1} parent=23 // pred_region
          %s496 = sand.u32 %s40, 1
          %s497 = scalar_lea.sflag [#allocation10], %s496
          %s498 = sand.u32 %s175, 1
          %s499 = scalar_lea.vmem [#allocation11], %s498
          %s501 = ssub.s32 16, 16
          %502 = vsyncadd %s497, %s501
          %s503 = smul.addr %s49, 16
          %s504 = scalar_lea.hbm %s4, %s503
          %s506 = sshll.u32 %s499, 4
          %s507 = int_to_ptr.vmem [resolvable:$true] %s506
          %509 = dma.hbm_to_vmem [thread:$0]  %s504, 16, %s507, %s497
        $region44: #{tpu_custom_call.1} parent=23 // pred_fallthru
          _
        // Predicated region
        $region45: #{tpu_custom_call.1} parent=23 // pred_check
          %p510 = pneg %p211
        $region46: #{tpu_custom_call.1} parent=23 // pred_check_branch
          %512 = sbr.rel (%p510) target = $region48
        $region47: #{tpu_custom_call.1} parent=23 // pred_region
          %s513 = sand.u32 %s40, 1
          %s514 = scalar_lea.sflag [#allocation13], %s513
          %s515 = sand.u32 %s201, 1
          %s516 = smul.addr %s515, 8
          %s517 = scalar_lea.vmem [#allocation12], %s516
          %s519 = ssub.s32 128, 128
          %520 = vsyncadd %s514, %s519
          %s521 = smul.addr %s49, 128
          %s522 = scalar_lea.hbm %s5, %s521
          %s524 = sshll.u32 %s517, 4
          %s525 = int_to_ptr.vmem [resolvable:$true] %s524
          %527 = dma.hbm_to_vmem [thread:$0]  %s522, 128, %s525, %s514
        $region48: #{tpu_custom_call.1} parent=23 // pred_fallthru
          _
        // Predicated region
        $region49: #{tpu_custom_call.1} parent=23 // pred_check
          %p528 = pneg %p237
        $region50: #{tpu_custom_call.1} parent=23 // pred_check_branch
          %530 = sbr.rel (%p528) target = $region52
        $region51: #{tpu_custom_call.1} parent=23 // pred_region
          %s531 = sand.u32 %s40, 1
          %s532 = scalar_lea.sflag [#allocation13], %s531
          %s533 = sand.u32 %s227, 1
          %s534 = scalar_lea.vmem [#allocation14], %s533
          %s536 = ssub.s32 16, 16
          %537 = vsyncadd %s532, %s536
          %s538 = smul.addr %s49, 16
          %s539 = scalar_lea.hbm %s6, %s538
          %s541 = sshll.u32 %s534, 4
          %s542 = int_to_ptr.vmem [resolvable:$true] %s541
          %544 = dma.hbm_to_vmem [thread:$0]  %s539, 16, %s542, %s532
        $region52: #{tpu_custom_call.1} parent=23 // pred_fallthru
          _
        // Predicated region
        $region53: #{tpu_custom_call.1} parent=23 // pred_check
          %p545 = pneg %p263
        $region54: #{tpu_custom_call.1} parent=23 // pred_check_branch
          %547 = sbr.rel (%p545) target = $region56
        $region55: #{tpu_custom_call.1} parent=23 // pred_region
          %s548 = sand.u32 %s40, 1
          %s549 = scalar_lea.sflag [#allocation16], %s548
          %s550 = sand.u32 %s253, 1
          %s551 = smul.addr %s550, 8
          %s552 = scalar_lea.vmem [#allocation15], %s551
          %s554 = ssub.s32 128, 128
          %555 = vsyncadd %s549, %s554
          %s556 = smul.addr %s49, 128
          %s557 = scalar_lea.hbm %s7, %s556
          %s559 = sshll.u32 %s552, 4
          %s560 = int_to_ptr.vmem [resolvable:$true] %s559
          %562 = dma.hbm_to_vmem [thread:$0]  %s557, 128, %s560, %s549
        $region56: #{tpu_custom_call.1} parent=23 // pred_fallthru
          _
        // Predicated region
        $region57: #{tpu_custom_call.1} parent=23 // pred_check
          %p563 = pneg %p289
        $region58: #{tpu_custom_call.1} parent=23 // pred_check_branch
          %565 = sbr.rel (%p563) target = $region60
        $region59: #{tpu_custom_call.1} parent=23 // pred_region
          %s566 = sand.u32 %s40, 1
          %s567 = scalar_lea.sflag [#allocation16], %s566
          %s568 = sand.u32 %s279, 1
          %s569 = scalar_lea.vmem [#allocation17], %s568
          %s571 = ssub.s32 16, 16
          %572 = vsyncadd %s567, %s571
          %s573 = smul.addr %s49, 16
          %s574 = scalar_lea.hbm %s8, %s573
          %s576 = sshll.u32 %s569, 4
          %s577 = int_to_ptr.vmem [resolvable:$true] %s576
          %579 = dma.hbm_to_vmem [thread:$0]  %s574, 16, %s577, %s567
        $region60: #{tpu_custom_call.1} parent=23 // pred_fallthru
          _
      $region24: #{tpu_custom_call.1} parent=5 // pred_fallthru
        _
      %p580 = scmp.le.s32.totalorder 1, %s40
      %p581 = scmp.lt.s32.totalorder %s40, 9
      %p582 = pnand %p580, %p581
      %p583 = pneg %p582
      // Predicated region
      $region61: #{tpu_custom_call.1} parent=5 // pred_check
        _
      $region62: #{tpu_custom_call.1} parent=5 // pred_check_branch
        %585 = sbr.rel (%p582) target = $region64
      $region63: #{tpu_custom_call.1} parent=5 // pred_region
        %s586 = ssub.s32 %s40, 1
        %s587 = sand.u32 %s74, 1
        %s588 = scalar_lea.sflag [#allocation4], %s587
        %s589 = sand.u32 %s74, 1
        %s590 = smul.addr %s589, 8
        %s591 = scalar_lea.vmem [#allocation3], %s590
        // Predicated region
        $region65: #{tpu_custom_call.1} parent=63 // pred_check
          %p592 = pneg %p87
        $region66: #{tpu_custom_call.1} parent=63 // pred_check_branch
          %594 = sbr.rel (%p592) target = $region68
        $region67: #{tpu_custom_call.1} parent=63 // pred_region
          %595 = dma.done %s588, 128
        $region68: #{tpu_custom_call.1} parent=63 // pred_fallthru
          _
        %s596 = sand.u32 %s45, 1
        %s597 = scalar_lea.sflag [#allocation7], %s596
        %s598 = sand.u32 %s100, 1
        %s599 = smul.addr %s598, 8
        %s600 = scalar_lea.vmem [#allocation6], %s599
        // Predicated region
        $region69: #{tpu_custom_call.1} parent=63 // pred_check
          %p601 = pneg %p113
        $region70: #{tpu_custom_call.1} parent=63 // pred_check_branch
          %603 = sbr.rel (%p601) target = $region72
        $region71: #{tpu_custom_call.1} parent=63 // pred_region
          %604 = dma.done %s597, 128
        $region72: #{tpu_custom_call.1} parent=63 // pred_fallthru
          _
        %s605 = sand.u32 %s45, 1
        %s606 = scalar_lea.sflag [#allocation7], %s605
        %s607 = sand.u32 %s126, 1
        %s608 = smul.addr %s607, 8
        %s609 = scalar_lea.vmem [#allocation8], %s608
        // Predicated region
        $region73: #{tpu_custom_call.1} parent=63 // pred_check
          %p610 = pneg %p139
        $region74: #{tpu_custom_call.1} parent=63 // pred_check_branch
          %612 = sbr.rel (%p610) target = $region76
        $region75: #{tpu_custom_call.1} parent=63 // pred_region
          %613 = dma.done %s606, 128
        $region76: #{tpu_custom_call.1} parent=63 // pred_fallthru
          _
        %s614 = sand.u32 %s45, 1
        %s615 = scalar_lea.sflag [#allocation10], %s614
        %s616 = sand.u32 %s152, 1
        %s617 = smul.addr %s616, 8
        %s618 = scalar_lea.vmem [#allocation9], %s617
        // Predicated region
        $region77: #{tpu_custom_call.1} parent=63 // pred_check
          %p619 = pneg %p165
        $region78: #{tpu_custom_call.1} parent=63 // pred_check_branch
          %621 = sbr.rel (%p619) target = $region80
        $region79: #{tpu_custom_call.1} parent=63 // pred_region
          %622 = dma.done %s615, 128
        $region80: #{tpu_custom_call.1} parent=63 // pred_fallthru
          _
        %s623 = sand.u32 %s45, 1
        %s624 = scalar_lea.sflag [#allocation10], %s623
        %s625 = sand.u32 %s178, 1
        %s626 = scalar_lea.vmem [#allocation11], %s625
        // Predicated region
        $region81: #{tpu_custom_call.1} parent=63 // pred_check
          %p627 = pneg %p191
        $region82: #{tpu_custom_call.1} parent=63 // pred_check_branch
          %629 = sbr.rel (%p627) target = $region84
        $region83: #{tpu_custom_call.1} parent=63 // pred_region
          %630 = dma.done %s624, 16
        $region84: #{tpu_custom_call.1} parent=63 // pred_fallthru
          _
        %s631 = sand.u32 %s45, 1
        %s632 = scalar_lea.sflag [#allocation13], %s631
        %s633 = sand.u32 %s204, 1
        %s634 = smul.addr %s633, 8
        %s635 = scalar_lea.vmem [#allocation12], %s634
        // Predicated region
        $region85: #{tpu_custom_call.1} parent=63 // pred_check
          %p636 = pneg %p217
        $region86: #{tpu_custom_call.1} parent=63 // pred_check_branch
          %638 = sbr.rel (%p636) target = $region88
        $region87: #{tpu_custom_call.1} parent=63 // pred_region
          %639 = dma.done %s632, 128
        $region88: #{tpu_custom_call.1} parent=63 // pred_fallthru
          _
        %s640 = sand.u32 %s45, 1
        %s641 = scalar_lea.sflag [#allocation13], %s640
        %s642 = sand.u32 %s230, 1
        %s643 = scalar_lea.vmem [#allocation14], %s642
        // Predicated region
        $region89: #{tpu_custom_call.1} parent=63 // pred_check
          %p644 = pneg %p243
        $region90: #{tpu_custom_call.1} parent=63 // pred_check_branch
          %646 = sbr.rel (%p644) target = $region92
        $region91: #{tpu_custom_call.1} parent=63 // pred_region
          %647 = dma.done %s641, 16
        $region92: #{tpu_custom_call.1} parent=63 // pred_fallthru
          _
        %s648 = sand.u32 %s45, 1
        %s649 = scalar_lea.sflag [#allocation16], %s648
        %s650 = sand.u32 %s256, 1
        %s651 = smul.addr %s650, 8
        %s652 = scalar_lea.vmem [#allocation15], %s651
        // Predicated region
        $region93: #{tpu_custom_call.1} parent=63 // pred_check
          %p653 = pneg %p269
        $region94: #{tpu_custom_call.1} parent=63 // pred_check_branch
          %655 = sbr.rel (%p653) target = $region96
        $region95: #{tpu_custom_call.1} parent=63 // pred_region
          %656 = dma.done %s649, 128
        $region96: #{tpu_custom_call.1} parent=63 // pred_fallthru
          _
        %s657 = sand.u32 %s45, 1
        %s658 = scalar_lea.sflag [#allocation16], %s657
        %s659 = sand.u32 %s282, 1
        %s660 = scalar_lea.vmem [#allocation17], %s659
        // Predicated region
        $region97: #{tpu_custom_call.1} parent=63 // pred_check
          %p661 = pneg %p295
        $region98: #{tpu_custom_call.1} parent=63 // pred_check_branch
          %663 = sbr.rel (%p661) target = $region100
        $region99: #{tpu_custom_call.1} parent=63 // pred_region
          %664 = dma.done %s658, 16
        $region100: #{tpu_custom_call.1} parent=63 // pred_fallthru
          _
        %s665 = sand.u32 %s74, 1
        %s666 = scalar_lea.sflag [#allocation4], %s665
        %s667 = sand.u32 %s74, 1
        %s668 = smul.addr %s667, 8
        %s669 = scalar_lea.vmem [#allocation3], %s668
        %p670 = pneg %p87
        %p671 = pneg %p84
        %s672 = sand.u32 %s45, 1
        %s673 = scalar_lea.sflag [#allocation7], %s672
        %s674 = sand.u32 %s100, 1
        %s675 = smul.addr %s674, 8
        %s676 = scalar_lea.vmem [#allocation6], %s675
        %p677 = pneg %p113
        %p678 = pneg %p110
        %s679 = sand.u32 %s45, 1
        %s680 = scalar_lea.sflag [#allocation7], %s679
        %s681 = sand.u32 %s126, 1
        %s682 = smul.addr %s681, 8
        %s683 = scalar_lea.vmem [#allocation8], %s682
        %p684 = pneg %p139
        %p685 = pneg %p136
        %s686 = sand.u32 %s45, 1
        %s687 = scalar_lea.sflag [#allocation10], %s686
        %s688 = sand.u32 %s152, 1
        %s689 = smul.addr %s688, 8
        %s690 = scalar_lea.vmem [#allocation9], %s689
        %p691 = pneg %p165
        %p692 = pneg %p162
        %s693 = sand.u32 %s45, 1
        %s694 = scalar_lea.sflag [#allocation10], %s693
        %s695 = sand.u32 %s178, 1
        %s696 = scalar_lea.vmem [#allocation11], %s695
        %p697 = pneg %p191
        %p698 = pneg %p188
        %s699 = sand.u32 %s45, 1
        %s700 = scalar_lea.sflag [#allocation13], %s699
        %s701 = sand.u32 %s204, 1
        %s702 = smul.addr %s701, 8
        %s703 = scalar_lea.vmem [#allocation12], %s702
        %p704 = pneg %p217
        %p705 = pneg %p214
        %s706 = sand.u32 %s45, 1
        %s707 = scalar_lea.sflag [#allocation13], %s706
        %s708 = sand.u32 %s230, 1
        %s709 = scalar_lea.vmem [#allocation14], %s708
        %p710 = pneg %p243
        %p711 = pneg %p240
        %s712 = sand.u32 %s45, 1
        %s713 = scalar_lea.sflag [#allocation16], %s712
        %s714 = sand.u32 %s256, 1
        %s715 = smul.addr %s714, 8
        %s716 = scalar_lea.vmem [#allocation15], %s715
        %p717 = pneg %p269
        %p718 = pneg %p266
        %s719 = sand.u32 %s45, 1
        %s720 = scalar_lea.sflag [#allocation16], %s719
        %s721 = sand.u32 %s282, 1
        %s722 = scalar_lea.vmem [#allocation17], %s721
        %p723 = pneg %p295
        %p724 = pneg %p292
        %p725 = pneg %p316
        %p726 = pneg %p313
        %p727 = pneg %p337
        %p728 = pneg %p334
        %p729 = pneg %p365
        %p730 = pneg %p362
        %s731 = sand.u32 %s352, 1
        %s732 = scalar_lea.sflag [#allocation5], %s731
        %s733 = sand.u32 %s352, 1
        %s734 = smul.addr %s733, 8
        %s735 = scalar_lea.vmem [#allocation18], %s734
        %p736 = pneg %p395
        %p737 = pneg %p392
        %s738 = sand.u32 %s382, 1
        %s739 = scalar_lea.sflag [#allocation20], %s738
        %s740 = sand.u32 %s382, 1
        %s741 = smul.addr %s740, 8
        %s742 = scalar_lea.vmem [#allocation19], %s741
        %v743 = vld [vmem:[%s591] sm:$0xff]
        %v744 = vld [vmem:[%s600] sm:$0xff]
        %v745 = vld [vmem:[%s609] sm:$0xff]
        %v746 = vld [vmem:[%s618] sm:$0xff]
        %v747 = vld [vmem:[%s626] sm:$0x1]
        %v749 = vlaneseq
        %v750 = vshrl.u32 %v749, 7
        %v751 = vsub.s32 0, %v750
        %v752 = vrot.slane %v747, %v751
        %vm754 = vcmask 261120
        %v756 = vsel %vm754, %v743, 0
        %v759 = vsel %vm754, %v746, 0
        %761 = vmatprep.subr.mxu0 0.0
        %762 = vmatpush1.xpose.msra.mxu0 %v759
        %763 = vmatprep.subr.mxu0 0.0
        %764 = vmatpush1.xpose.msra.mxu0 0.0
        %765 = vmatprep.subr.mxu0 0.0
        %766 = vmatpush1.xpose.msra.mxu0 0.0
        %767 = vmatprep.subr.mxu0 0.0
        %768 = vmatpush1.xpose.msra.mxu0 0.0
        %769 = vmatprep.subr.mxu0 0.0
        %770 = vmatpush1.xpose.msra.mxu0 0.0
        %771 = vmatprep.subr.mxu0 0.0
        %772 = vmatpush1.xpose.msra.mxu0 0.0
        %773 = vmatprep.subr.mxu0 0.0
        %774 = vmatpush1.xpose.msra.mxu0 0.0
        %775 = vmatprep.subr.mxu0 0.0
        %776 = vmatpush1.xpose.msra.mxu0 0.0
        %777 = vmatprep.subr.mxu0 0.0
        %778 = vmatpush1.xpose.msra.mxu0 0.0
        %779 = vmatprep.subr.mxu0 0.0
        %780 = vmatpush1.xpose.msra.mxu0 0.0
        %781 = vmatprep.subr.mxu0 0.0
        %782 = vmatpush1.xpose.msra.mxu0 0.0
        %783 = vmatprep.subr.mxu0 0.0
        %784 = vmatpush1.xpose.msra.mxu0 0.0
        %785 = vmatprep.subr.mxu0 0.0
        %786 = vmatpush1.xpose.msra.mxu0 0.0
        %787 = vmatprep.subr.mxu0 0.0
        %788 = vmatpush1.xpose.msra.mxu0 0.0
        %789 = vmatprep.subr.mxu0 0.0
        %790 = vmatpush1.xpose.msra.mxu0 0.0
        %791 = vmatprep.subr.mxu0 0.0
        %792 = vmatpush1.xpose.msra.mxu0 0.0
        %793 = vmatprep.subr.mxu0 0.0
        %794 = vmatpush1.xpose.msra.mxu0 0.0
        %795 = vmatprep.subr.mxu0 0.0
        %796 = vmatpush1.xpose.msra.mxu0 0.0
        %797 = vmatprep.subr.mxu0 0.0
        %798 = vmatpush1.xpose.msra.mxu0 0.0
        %799 = vmatprep.subr.mxu0 0.0
        %800 = vmatpush1.xpose.msra.mxu0 0.0
        %801 = vmatprep.subr.mxu0 0.0
        %802 = vmatpush1.xpose.msra.mxu0 0.0
        %803 = vmatprep.subr.mxu0 0.0
        %804 = vmatpush1.xpose.msra.mxu0 0.0
        %805 = vmatprep.subr.mxu0 0.0
        %806 = vmatpush1.xpose.msra.mxu0 0.0
        %807 = vmatprep.subr.mxu0 0.0
        %808 = vmatpush1.xpose.msra.mxu0 0.0
        %809 = vmatprep.subr.mxu0 0.0
        %810 = vmatpush1.xpose.msra.mxu0 0.0
        %811 = vmatprep.subr.mxu0 0.0
        %812 = vmatpush1.xpose.msra.mxu0 0.0
        %813 = vmatprep.subr.mxu0 0.0
        %814 = vmatpush1.xpose.msra.mxu0 0.0
        %815 = vmatprep.subr.mxu0 0.0
        %816 = vmatpush1.xpose.msra.mxu0 0.0
        %817 = vmatprep.subr.mxu0 0.0
        %818 = vmatpush1.xpose.msra.mxu0 0.0
        %819 = vmatprep.subr.mxu0 0.0
        %820 = vmatpush1.xpose.msra.mxu0 0.0
        %821 = vmatprep.subr.mxu0 0.0
        %822 = vmatpush1.xpose.msra.mxu0 0.0
        %823 = vmatprep.subr.mxu0 0.0
        %824 = vmatpush1.xpose.msra.mxu0 0.0
        %825 = vmatprep.mubr.f32.mxu0 0.0
        %826 = vmatmul.mubr.f32.gmra.mrb[0].mxu0 %v756
        %v827 = vpop.f32.mrb[0].mxu0
        %v828 = vadd.f32 %v752, %v827
        %v829 = vpop.f32.mrb[0].mxu0
        %830 = vdwg.mxu0
        %v831 = vmul.f32 %v828, 0.35355338
        %v832 = vld [vmem:[%s635] sm:$0xff]
        %v833 = vld [vmem:[%s643] sm:$0x1]
        %v835 = vlaneseq
        %v836 = vshrl.u32 %v835, 7
        %v837 = vsub.s32 0, %v836
        %v838 = vrot.slane %v833, %v837
        %v841 = vsel %vm754, %v744, 0
        %v844 = vsel %vm754, %v832, 0
        %846 = vmatprep.subr.mxu0 0.0
        %847 = vmatpush1.xpose.msra.mxu0 %v844
        %848 = vmatprep.subr.mxu0 0.0
        %849 = vmatpush1.xpose.msra.mxu0 0.0
        %850 = vmatprep.subr.mxu0 0.0
        %851 = vmatpush1.xpose.msra.mxu0 0.0
        %852 = vmatprep.subr.mxu0 0.0
        %853 = vmatpush1.xpose.msra.mxu0 0.0
        %854 = vmatprep.subr.mxu0 0.0
        %855 = vmatpush1.xpose.msra.mxu0 0.0
        %856 = vmatprep.subr.mxu0 0.0
        %857 = vmatpush1.xpose.msra.mxu0 0.0
        %858 = vmatprep.subr.mxu0 0.0
        %859 = vmatpush1.xpose.msra.mxu0 0.0
        %860 = vmatprep.subr.mxu0 0.0
        %861 = vmatpush1.xpose.msra.mxu0 0.0
        %862 = vmatprep.subr.mxu0 0.0
        %863 = vmatpush1.xpose.msra.mxu0 0.0
        %864 = vmatprep.subr.mxu0 0.0
        %865 = vmatpush1.xpose.msra.mxu0 0.0
        %866 = vmatprep.subr.mxu0 0.0
        %867 = vmatpush1.xpose.msra.mxu0 0.0
        %868 = vmatprep.subr.mxu0 0.0
        %869 = vmatpush1.xpose.msra.mxu0 0.0
        %870 = vmatprep.subr.mxu0 0.0
        %871 = vmatpush1.xpose.msra.mxu0 0.0
        %872 = vmatprep.subr.mxu0 0.0
        %873 = vmatpush1.xpose.msra.mxu0 0.0
        %874 = vmatprep.subr.mxu0 0.0
        %875 = vmatpush1.xpose.msra.mxu0 0.0
        %876 = vmatprep.subr.mxu0 0.0
        %877 = vmatpush1.xpose.msra.mxu0 0.0
        %878 = vmatprep.subr.mxu0 0.0
        %879 = vmatpush1.xpose.msra.mxu0 0.0
        %880 = vmatprep.subr.mxu0 0.0
        %881 = vmatpush1.xpose.msra.mxu0 0.0
        %882 = vmatprep.subr.mxu0 0.0
        %883 = vmatpush1.xpose.msra.mxu0 0.0
        %884 = vmatprep.subr.mxu0 0.0
        %885 = vmatpush1.xpose.msra.mxu0 0.0
        %886 = vmatprep.subr.mxu0 0.0
        %887 = vmatpush1.xpose.msra.mxu0 0.0
        %888 = vmatprep.subr.mxu0 0.0
        %889 = vmatpush1.xpose.msra.mxu0 0.0
        %890 = vmatprep.subr.mxu0 0.0
        %891 = vmatpush1.xpose.msra.mxu0 0.0
        %892 = vmatprep.subr.mxu0 0.0
        %893 = vmatpush1.xpose.msra.mxu0 0.0
        %894 = vmatprep.subr.mxu0 0.0
        %895 = vmatpush1.xpose.msra.mxu0 0.0
        %896 = vmatprep.subr.mxu0 0.0
        %897 = vmatpush1.xpose.msra.mxu0 0.0
        %898 = vmatprep.subr.mxu0 0.0
        %899 = vmatpush1.xpose.msra.mxu0 0.0
        %900 = vmatprep.subr.mxu0 0.0
        %901 = vmatpush1.xpose.msra.mxu0 0.0
        %902 = vmatprep.subr.mxu0 0.0
        %903 = vmatpush1.xpose.msra.mxu0 0.0
        %904 = vmatprep.subr.mxu0 0.0
        %905 = vmatpush1.xpose.msra.mxu0 0.0
        %906 = vmatprep.subr.mxu0 0.0
        %907 = vmatpush1.xpose.msra.mxu0 0.0
        %908 = vmatprep.subr.mxu0 0.0
        %909 = vmatpush1.xpose.msra.mxu0 0.0
        %910 = vmatprep.mubr.f32.mxu0 0.0
        %911 = vmatmul.mubr.f32.gmra.mrb[0].mxu0 %v841
        %v912 = vpop.f32.mrb[0].mxu0
        %v913 = vadd.f32 %v838, %v912
        %v914 = vpop.f32.mrb[0].mxu0
        %915 = vdwg.mxu0
        %v916 = vld [vmem:[%s652] sm:$0xff]
        %v917 = vld [vmem:[%s660] sm:$0x1]
        %v919 = vlaneseq
        %v920 = vshrl.u32 %v919, 7
        %v921 = vsub.s32 0, %v920
        %v922 = vrot.slane %v917, %v921
        %v925 = vsel %vm754, %v745, 0
        %v928 = vsel %vm754, %v916, 0
        %930 = vmatprep.subr.mxu0 0.0
        %931 = vmatpush1.xpose.msra.mxu0 %v928
        %932 = vmatprep.subr.mxu0 0.0
        %933 = vmatpush1.xpose.msra.mxu0 0.0
        %934 = vmatprep.subr.mxu0 0.0
        %935 = vmatpush1.xpose.msra.mxu0 0.0
        %936 = vmatprep.subr.mxu0 0.0
        %937 = vmatpush1.xpose.msra.mxu0 0.0
        %938 = vmatprep.subr.mxu0 0.0
        %939 = vmatpush1.xpose.msra.mxu0 0.0
        %940 = vmatprep.subr.mxu0 0.0
        %941 = vmatpush1.xpose.msra.mxu0 0.0
        %942 = vmatprep.subr.mxu0 0.0
        %943 = vmatpush1.xpose.msra.mxu0 0.0
        %944 = vmatprep.subr.mxu0 0.0
        %945 = vmatpush1.xpose.msra.mxu0 0.0
        %946 = vmatprep.subr.mxu0 0.0
        %947 = vmatpush1.xpose.msra.mxu0 0.0
        %948 = vmatprep.subr.mxu0 0.0
        %949 = vmatpush1.xpose.msra.mxu0 0.0
        %950 = vmatprep.subr.mxu0 0.0
        %951 = vmatpush1.xpose.msra.mxu0 0.0
        %952 = vmatprep.subr.mxu0 0.0
        %953 = vmatpush1.xpose.msra.mxu0 0.0
        %954 = vmatprep.subr.mxu0 0.0
        %955 = vmatpush1.xpose.msra.mxu0 0.0
        %956 = vmatprep.subr.mxu0 0.0
        %957 = vmatpush1.xpose.msra.mxu0 0.0
        %958 = vmatprep.subr.mxu0 0.0
        %959 = vmatpush1.xpose.msra.mxu0 0.0
        %960 = vmatprep.subr.mxu0 0.0
        %961 = vmatpush1.xpose.msra.mxu0 0.0
        %962 = vmatprep.subr.mxu0 0.0
        %963 = vmatpush1.xpose.msra.mxu0 0.0
        %964 = vmatprep.subr.mxu0 0.0
        %965 = vmatpush1.xpose.msra.mxu0 0.0
        %966 = vmatprep.subr.mxu0 0.0
        %967 = vmatpush1.xpose.msra.mxu0 0.0
        %968 = vmatprep.subr.mxu0 0.0
        %969 = vmatpush1.xpose.msra.mxu0 0.0
        %970 = vmatprep.subr.mxu0 0.0
        %971 = vmatpush1.xpose.msra.mxu0 0.0
        %972 = vmatprep.subr.mxu0 0.0
        %973 = vmatpush1.xpose.msra.mxu0 0.0
        %974 = vmatprep.subr.mxu0 0.0
        %975 = vmatpush1.xpose.msra.mxu0 0.0
        %976 = vmatprep.subr.mxu0 0.0
        %977 = vmatpush1.xpose.msra.mxu0 0.0
        %978 = vmatprep.subr.mxu0 0.0
        %979 = vmatpush1.xpose.msra.mxu0 0.0
        %980 = vmatprep.subr.mxu0 0.0
        %981 = vmatpush1.xpose.msra.mxu0 0.0
        %982 = vmatprep.subr.mxu0 0.0
        %983 = vmatpush1.xpose.msra.mxu0 0.0
        %984 = vmatprep.subr.mxu0 0.0
        %985 = vmatpush1.xpose.msra.mxu0 0.0
        %986 = vmatprep.subr.mxu0 0.0
        %987 = vmatpush1.xpose.msra.mxu0 0.0
        %988 = vmatprep.subr.mxu0 0.0
        %989 = vmatpush1.xpose.msra.mxu0 0.0
        %990 = vmatprep.subr.mxu0 0.0
        %991 = vmatpush1.xpose.msra.mxu0 0.0
        %992 = vmatprep.subr.mxu0 0.0
        %993 = vmatpush1.xpose.msra.mxu0 0.0
        %994 = vmatprep.mubr.f32.mxu0 0.0
        %995 = vmatmul.mubr.f32.gmra.mrb[0].mxu0 %v925
        %v996 = vpop.f32.mrb[0].mxu0
        %v997 = vadd.f32 %v922, %v996
        %v998 = vpop.f32.mrb[0].mxu0
        %999 = vdwg.mxu0
        %vm1000 = vcmask 64512
        %v1002 = vsel %vm1000, %v831, 0
        %v1005 = vsel %vm1000, %v913, 0
        %1007 = vmatprep.subr.mxu0 0.0
        %1008 = vmatpush1.xpose.msra.mxu0 %v1005
        %1009 = vmatprep.subr.mxu0 0.0
        %1010 = vmatpush1.xpose.msra.mxu0 0.0
        %1011 = vmatprep.subr.mxu0 0.0
        %1012 = vmatpush1.xpose.msra.mxu0 0.0
        %1013 = vmatprep.subr.mxu0 0.0
        %1014 = vmatpush1.xpose.msra.mxu0 0.0
        %1015 = vmatprep.subr.mxu0 0.0
        %1016 = vmatpush1.xpose.msra.mxu0 0.0
        %1017 = vmatprep.subr.mxu0 0.0
        %1018 = vmatpush1.xpose.msra.mxu0 0.0
        %1019 = vmatprep.subr.mxu0 0.0
        %1020 = vmatpush1.xpose.msra.mxu0 0.0
        %1021 = vmatprep.subr.mxu0 0.0
        %1022 = vmatpush1.xpose.msra.mxu0 0.0
        %1023 = vmatprep.subr.mxu0 0.0
        %1024 = vmatpush1.xpose.msra.mxu0 0.0
        %1025 = vmatprep.subr.mxu0 0.0
        %1026 = vmatpush1.xpose.msra.mxu0 0.0
        %1027 = vmatprep.subr.mxu0 0.0
        %1028 = vmatpush1.xpose.msra.mxu0 0.0
        %1029 = vmatprep.subr.mxu0 0.0
        %1030 = vmatpush1.xpose.msra.mxu0 0.0
        %1031 = vmatprep.subr.mxu0 0.0
        %1032 = vmatpush1.xpose.msra.mxu0 0.0
        %1033 = vmatprep.subr.mxu0 0.0
        %1034 = vmatpush1.xpose.msra.mxu0 0.0
        %1035 = vmatprep.subr.mxu0 0.0
        %1036 = vmatpush1.xpose.msra.mxu0 0.0
        %1037 = vmatprep.subr.mxu0 0.0
        %1038 = vmatpush1.xpose.msra.mxu0 0.0
        %1039 = vmatprep.subr.mxu0 0.0
        %1040 = vmatpush1.xpose.msra.mxu0 0.0
        %1041 = vmatprep.subr.mxu0 0.0
        %1042 = vmatpush1.xpose.msra.mxu0 0.0
        %1043 = vmatprep.subr.mxu0 0.0
        %1044 = vmatpush1.xpose.msra.mxu0 0.0
        %1045 = vmatprep.subr.mxu0 0.0
        %1046 = vmatpush1.xpose.msra.mxu0 0.0
        %1047 = vmatprep.subr.mxu0 0.0
        %1048 = vmatpush1.xpose.msra.mxu0 0.0
        %1049 = vmatprep.subr.mxu0 0.0
        %1050 = vmatpush1.xpose.msra.mxu0 0.0
        %1051 = vmatprep.subr.mxu0 0.0
        %1052 = vmatpush1.xpose.msra.mxu0 0.0
        %1053 = vmatprep.subr.mxu0 0.0
        %1054 = vmatpush1.xpose.msra.mxu0 0.0
        %1055 = vmatprep.subr.mxu0 0.0
        %1056 = vmatpush1.xpose.msra.mxu0 0.0
        %1057 = vmatprep.subr.mxu0 0.0
        %1058 = vmatpush1.xpose.msra.mxu0 0.0
        %1059 = vmatprep.subr.mxu0 0.0
        %1060 = vmatpush1.xpose.msra.mxu0 0.0
        %1061 = vmatprep.subr.mxu0 0.0
        %1062 = vmatpush1.xpose.msra.mxu0 0.0
        %1063 = vmatprep.subr.mxu0 0.0
        %1064 = vmatpush1.xpose.msra.mxu0 0.0
        %1065 = vmatprep.subr.mxu0 0.0
        %1066 = vmatpush1.xpose.msra.mxu0 0.0
        %1067 = vmatprep.subr.mxu0 0.0
        %1068 = vmatpush1.xpose.msra.mxu0 0.0
        %1069 = vmatprep.subr.mxu0 0.0
        %1070 = vmatpush1.xpose.msra.mxu0 0.0
        %1071 = vmatprep.mubr.f32.mxu0 0.0
        %1072 = vmatmul.mubr.f32.gmra.mrb[0].mxu0 %v1002
        %v1073 = vpop.f32.mrb[0].mxu0
        %v1074 = vadd.f32 0.0, %v1073
        %v1075 = vpop.f32.mrb[0].mxu0
        %1076 = vdwg.mxu0
        %v1077 = vsel %vm1000, %v1074, -inf
        %1078 = vmax.xlane.f32.xlu0 %v1077
        %v1079 = vpop.xlane.xlu0 %1078
        %v1080 = vsub.f32 %v1074, %v1079
        %v1081 = vmul.f32 %v1080, 1.442695
        %v1082 = vpow.pop %v1081
        %v1083 = vsel %vm1000, %v1082, 0.0
        %1084 = vadd.xlane.f32.xlu0 %v1083
        %v1085 = vpop.xlane.xlu0 %1084
        %v1086 = vrcp.pop %v1085
        %v1087 = vmul.f32 %v1082, %v1086
        %1088 = vst.msk [vmem:[%s742] sm:$0xff] %vm1000, %v1087
        %v1090 = vsel %vm1000, %v1087, 0
        %1092 = vmatprep.subr.mxu0 0.0
        %1093 = vmatpush1.msra.mxu0 %v997
        %1094 = vmatprep.subr.mxu0 0.0
        %1095 = vmatpush1.msra.mxu0 0.0
        %1096 = vmatprep.subr.mxu0 0.0
        %1097 = vmatpush1.msra.mxu0 0.0
        %1098 = vmatprep.subr.mxu0 0.0
        %1099 = vmatpush1.msra.mxu0 0.0
        %1100 = vmatprep.subr.mxu0 0.0
        %1101 = vmatpush1.msra.mxu0 0.0
        %1102 = vmatprep.subr.mxu0 0.0
        %1103 = vmatpush1.msra.mxu0 0.0
        %1104 = vmatprep.subr.mxu0 0.0
        %1105 = vmatpush1.msra.mxu0 0.0
        %1106 = vmatprep.subr.mxu0 0.0
        %1107 = vmatpush1.msra.mxu0 0.0
        %1108 = vmatprep.subr.mxu0 0.0
        %1109 = vmatpush1.msra.mxu0 0.0
        %1110 = vmatprep.subr.mxu0 0.0
        %1111 = vmatpush1.msra.mxu0 0.0
        %1112 = vmatprep.subr.mxu0 0.0
        %1113 = vmatpush1.msra.mxu0 0.0
        %1114 = vmatprep.subr.mxu0 0.0
        %1115 = vmatpush1.msra.mxu0 0.0
        %1116 = vmatprep.subr.mxu0 0.0
        %1117 = vmatpush1.msra.mxu0 0.0
        %1118 = vmatprep.subr.mxu0 0.0
        %1119 = vmatpush1.msra.mxu0 0.0
        %1120 = vmatprep.subr.mxu0 0.0
        %1121 = vmatpush1.msra.mxu0 0.0
        %1122 = vmatprep.subr.mxu0 0.0
        %1123 = vmatpush1.msra.mxu0 0.0
        %1124 = vmatprep.subr.mxu0 0.0
        %1125 = vmatpush1.msra.mxu0 0.0
        %1126 = vmatprep.subr.mxu0 0.0
        %1127 = vmatpush1.msra.mxu0 0.0
        %1128 = vmatprep.subr.mxu0 0.0
        %1129 = vmatpush1.msra.mxu0 0.0
        %1130 = vmatprep.subr.mxu0 0.0
        %1131 = vmatpush1.msra.mxu0 0.0
        %1132 = vmatprep.subr.mxu0 0.0
        %1133 = vmatpush1.msra.mxu0 0.0
        %1134 = vmatprep.subr.mxu0 0.0
        %1135 = vmatpush1.msra.mxu0 0.0
        %1136 = vmatprep.subr.mxu0 0.0
        %1137 = vmatpush1.msra.mxu0 0.0
        %1138 = vmatprep.subr.mxu0 0.0
        %1139 = vmatpush1.msra.mxu0 0.0
        %1140 = vmatprep.subr.mxu0 0.0
        %1141 = vmatpush1.msra.mxu0 0.0
        %1142 = vmatprep.subr.mxu0 0.0
        %1143 = vmatpush1.msra.mxu0 0.0
        %1144 = vmatprep.subr.mxu0 0.0
        %1145 = vmatpush1.msra.mxu0 0.0
        %1146 = vmatprep.subr.mxu0 0.0
        %1147 = vmatpush1.msra.mxu0 0.0
        %1148 = vmatprep.subr.mxu0 0.0
        %1149 = vmatpush1.msra.mxu0 0.0
        %1150 = vmatprep.subr.mxu0 0.0
        %1151 = vmatpush1.msra.mxu0 0.0
        %1152 = vmatprep.subr.mxu0 0.0
        %1153 = vmatpush1.msra.mxu0 0.0
        %1154 = vmatprep.subr.mxu0 0.0
        %1155 = vmatpush1.msra.mxu0 0.0
        %1156 = vmatprep.mubr.f32.mxu0 0.0
        %1157 = vmatmul.mubr.f32.gmra.mrb[0].mxu0 %v1090
        %v1158 = vpop.f32.mrb[0].mxu0
        %v1159 = vadd.f32 0.0, %v1158
        %v1160 = vpop.f32.mrb[0].mxu0
        %1161 = vdwg.mxu0
        %s1162 = smul.u32 %s52, 8
        %s1163 = scalar_lea.vmem [#allocation2], %s1162
        %1164 = vst.msk [vmem:[%s1163] sm:$0xff] %vm1000, %v1159
        %p1165 = scmp.eq.s32.totalorder %s52, 3
        // Predicated region
        $region101: #{tpu_custom_call.1} parent=63 // pred_check
          %p1166 = pneg %p1165
        $region102: #{tpu_custom_call.1} parent=63 // pred_check_branch
          %1168 = sbr.rel (%p1166) target = $region104
        $region103: #{tpu_custom_call.1} parent=63 // pred_region
          %v1169 = vld [vmem:[#allocation2] sm:$0xff]
          %s1170 = scalar_lea.vmem [#allocation2], 8
          %v1171 = vld [vmem:[%s1170] sm:$0xff]
          %s1172 = scalar_lea.vmem [#allocation2], 16
          %v1173 = vld [vmem:[%s1172] sm:$0xff]
          %s1174 = scalar_lea.vmem [#allocation2], 24
          %v1175 = vld [vmem:[%s1174] sm:$0xff]
          %1177 = vrot.lane.b32.xlu0 %v1171, 8
          %v1178 = vpop.permute.xlu0 %1177
          %1181 = vrot.lane.b32.xlu0 %v1173, 16
          %v1182 = vpop.permute.xlu0 %1181
          %1185 = vrot.lane.b32.xlu0 %v1175, 24
          %v1186 = vpop.permute.xlu0 %1185
          %v1188 = vsel %vm1000, %v1169, %v1178
          %vm1189 = vcmask 130048
          %v1190 = vsel %vm1189, %v1188, %v1182
          %vm1191 = vcmask 195584
          %v1192 = vsel %vm1191, %v1190, %v1186
          %v1193 = vld [vmem:[%s9] sm:$0xff]
          %v1194 = vld [vmem:[%s9 + $0x8] sm:$0xff]
          %v1195 = vld [vmem:[%s9 + $0x10] sm:$0xff]
          %v1196 = vld [vmem:[%s9 + $0x18] sm:$0xff]
          %v1197 = vld [vmem:[%s10] sm:$0x1]
          %v1199 = vlaneseq
          %v1200 = vshrl.u32 %v1199, 7
          %v1201 = vsub.s32 0, %v1200
          %v1202 = vrot.slane %v1197, %v1201
          %v1205 = vsel %vm754, %v1192, 0
          %v1208 = vsel %vm754, %v1193, 0
          %v1211 = vsel %vm754, %v1194, 0
          %v1214 = vsel %vm754, %v1195, 0
          %v1217 = vsel %vm754, %v1196, 0
          %1219 = vmatprep.subr.mxu0 0.0
          %1220 = vmatpush1.xpose.msra.mxu0 %v1208
          %1221 = vmatprep.subr.mxu0 0.0
          %1222 = vmatpush1.xpose.msra.mxu0 %v1211
          %1223 = vmatprep.subr.mxu0 0.0
          %1224 = vmatpush1.xpose.msra.mxu0 %v1214
          %1225 = vmatprep.subr.mxu0 0.0
          %1226 = vmatpush1.xpose.msra.mxu0 %v1217
          %1227 = vmatprep.subr.mxu0 0.0
          %1228 = vmatpush1.xpose.msra.mxu0 0.0
          %1229 = vmatprep.subr.mxu0 0.0
          %1230 = vmatpush1.xpose.msra.mxu0 0.0
          %1231 = vmatprep.subr.mxu0 0.0
          %1232 = vmatpush1.xpose.msra.mxu0 0.0
          %1233 = vmatprep.subr.mxu0 0.0
          %1234 = vmatpush1.xpose.msra.mxu0 0.0
          %1235 = vmatprep.subr.mxu0 0.0
          %1236 = vmatpush1.xpose.msra.mxu0 0.0
          %1237 = vmatprep.subr.mxu0 0.0
          %1238 = vmatpush1.xpose.msra.mxu0 0.0
          %1239 = vmatprep.subr.mxu0 0.0
          %1240 = vmatpush1.xpose.msra.mxu0 0.0
          %1241 = vmatprep.subr.mxu0 0.0
          %1242 = vmatpush1.xpose.msra.mxu0 0.0
          %1243 = vmatprep.subr.mxu0 0.0
          %1244 = vmatpush1.xpose.msra.mxu0 0.0
          %1245 = vmatprep.subr.mxu0 0.0
          %1246 = vmatpush1.xpose.msra.mxu0 0.0
          %1247 = vmatprep.subr.mxu0 0.0
          %1248 = vmatpush1.xpose.msra.mxu0 0.0
          %1249 = vmatprep.subr.mxu0 0.0
          %1250 = vmatpush1.xpose.msra.mxu0 0.0
          %1251 = vmatprep.subr.mxu0 0.0
          %1252 = vmatpush1.xpose.msra.mxu0 0.0
          %1253 = vmatprep.subr.mxu0 0.0
          %1254 = vmatpush1.xpose.msra.mxu0 0.0
          %1255 = vmatprep.subr.mxu0 0.0
          %1256 = vmatpush1.xpose.msra.mxu0 0.0
          %1257 = vmatprep.subr.mxu0 0.0
          %1258 = vmatpush1.xpose.msra.mxu0 0.0
          %1259 = vmatprep.subr.mxu0 0.0
          %1260 = vmatpush1.xpose.msra.mxu0 0.0
          %1261 = vmatprep.subr.mxu0 0.0
          %1262 = vmatpush1.xpose.msra.mxu0 0.0
          %1263 = vmatprep.subr.mxu0 0.0
          %1264 = vmatpush1.xpose.msra.mxu0 0.0
          %1265 = vmatprep.subr.mxu0 0.0
          %1266 = vmatpush1.xpose.msra.mxu0 0.0
          %1267 = vmatprep.subr.mxu0 0.0
          %1268 = vmatpush1.xpose.msra.mxu0 0.0
          %1269 = vmatprep.subr.mxu0 0.0
          %1270 = vmatpush1.xpose.msra.mxu0 0.0
          %1271 = vmatprep.subr.mxu0 0.0
          %1272 = vmatpush1.xpose.msra.mxu0 0.0
          %1273 = vmatprep.subr.mxu0 0.0
          %1274 = vmatpush1.xpose.msra.mxu0 0.0
          %1275 = vmatprep.subr.mxu0 0.0
          %1276 = vmatpush1.xpose.msra.mxu0 0.0
          %1277 = vmatprep.subr.mxu0 0.0
          %1278 = vmatpush1.xpose.msra.mxu0 0.0
          %1279 = vmatprep.subr.mxu0 0.0
          %1280 = vmatpush1.xpose.msra.mxu0 0.0
          %1281 = vmatprep.subr.mxu0 0.0
          %1282 = vmatpush1.xpose.msra.mxu0 0.0
          %1283 = vmatprep.mubr.f32.mxu0 0.0
          %1284 = vmatmul.mubr.f32.gmra.mrb[0].mxu0 %v1205
          %v1285 = vpop.f32.mrb[0].mxu0
          %v1286 = vadd.f32 %v1202, %v1285
          %v1287 = vpop.f32.mrb[0].mxu0
          %1288 = vdwg.mxu0
          %1289 = vst.msk [vmem:[%s735] sm:$0xff] %vm754, %v1286
        $region104: #{tpu_custom_call.1} parent=63 // pred_fallthru
          _
        %s1290 = sand.u32 %s352, 1
        %s1291 = scalar_lea.sflag [#allocation5], %s1290
        %s1292 = sand.u32 %s352, 1
        %s1293 = smul.addr %s1292, 8
        %s1294 = scalar_lea.vmem [#allocation18], %s1293
        %s1295 = sand.u32 %s382, 1
        %s1296 = scalar_lea.sflag [#allocation20], %s1295
        %s1297 = sand.u32 %s382, 1
        %s1298 = smul.addr %s1297, 8
        %s1299 = scalar_lea.vmem [#allocation19], %s1298
        // Predicated region
        $region105: #{tpu_custom_call.1} parent=63 // pred_check
          %p1300 = pneg %p362
        $region106: #{tpu_custom_call.1} parent=63 // pred_check_branch
          %1302 = sbr.rel (%p1300) target = $region108
        $region107: #{tpu_custom_call.1} parent=63 // pred_region
          %s1304 = ssub.s32 128, 128
          %1305 = vsyncadd %s1291, %s1304
          %s1306 = sadd.s32 %s51, %s50
          %s1307 = smul.addr %s1306, 128
          %s1308 = scalar_lea.hbm %s11, %s1307
          %s1310 = sshll.u32 %s1294, 4
          %s1311 = int_to_ptr.vmem [resolvable:$true] %s1310
          %1313 = dma.vmem_to_hbm [thread:$0]  %s1311, 128, %s1308, %s1291
        $region108: #{tpu_custom_call.1} parent=63 // pred_fallthru
          _
        // Predicated region
        $region109: #{tpu_custom_call.1} parent=63 // pred_check
          %p1314 = pneg %p392
        $region110: #{tpu_custom_call.1} parent=63 // pred_check_branch
          %1316 = sbr.rel (%p1314) target = $region112
        $region111: #{tpu_custom_call.1} parent=63 // pred_region
          %s1318 = ssub.s32 128, 128
          %1319 = vsyncadd %s1296, %s1318
          %s1320 = sadd.s32 %s51, %s52
          %s1321 = smul.addr %s50, 4
          %s1322 = sadd.s32 %s1320, %s1321
          %s1323 = smul.addr %s1322, 128
          %s1324 = scalar_lea.hbm %s12, %s1323
          %s1326 = sshll.u32 %s1299, 4
          %s1327 = int_to_ptr.vmem [resolvable:$true] %s1326
          %1329 = dma.vmem_to_hbm [thread:$0]  %s1327, 128, %s1324, %s1296
        $region112: #{tpu_custom_call.1} parent=63 // pred_fallthru
          _
      $region64: #{tpu_custom_call.1} parent=5 // pred_fallthru
        _
      %p1330 = scmp.le.s32.totalorder 2, %s40
      // Predicated region
      $region113: #{tpu_custom_call.1} parent=5 // pred_check
        %p1331 = pneg %p1330
      $region114: #{tpu_custom_call.1} parent=5 // pred_check_branch
        %1333 = sbr.rel (%p1331) target = $region116
      $region115: #{tpu_custom_call.1} parent=5 // pred_region
        %s1334 = ssub.s32 %s40, 2
        // Predicated region
        $region117: #{tpu_custom_call.1} parent=115 // pred_check
          %p1335 = pneg %p368
        $region118: #{tpu_custom_call.1} parent=115 // pred_check_branch
          %1337 = sbr.rel (%p1335) target = $region120
        $region119: #{tpu_custom_call.1} parent=115 // pred_region
          %s1338 = sand.u32 %s353, 1
          %s1339 = scalar_lea.sflag [#allocation5], %s1338
          %s1340 = sand.u32 %s353, 1
          %s1341 = smul.addr %s1340, 8
          %s1342 = scalar_lea.vmem [#allocation18], %s1341
          %1343 = dma.done %s1339, 128
        $region120: #{tpu_custom_call.1} parent=115 // pred_fallthru
          _
        // Predicated region
        $region121: #{tpu_custom_call.1} parent=115 // pred_check
          %p1344 = pneg %p398
        $region122: #{tpu_custom_call.1} parent=115 // pred_check_branch
          %1346 = sbr.rel (%p1344) target = $region124
        $region123: #{tpu_custom_call.1} parent=115 // pred_region
          %s1347 = sand.u32 %s383, 1
          %s1348 = scalar_lea.sflag [#allocation20], %s1347
          %s1349 = sand.u32 %s383, 1
          %s1350 = smul.addr %s1349, 8
          %s1351 = scalar_lea.vmem [#allocation19], %s1350
          %1352 = dma.done %s1348, 128
        $region124: #{tpu_custom_call.1} parent=115 // pred_fallthru
          _
      $region116: #{tpu_custom_call.1} parent=5 // pred_fallthru
        _
    $region6: #{tpu_custom_call.1} parent=1 // loop_footer
      %s44 = sadd.s32 1, %s40
    $region7: #{tpu_custom_call.1} parent=1 // loop_footer_branch
      %39 = sbr.rel target = $region3
    $region8: #{tpu_custom_call.1} parent=1 // loop_exit
      _
    %1353 = vsyncpa [#allocation4], 1
    %s1354 = scalar_lea.sflag [#allocation4], 1
    %1355 = vsyncpa %s1354, 1
    %1356 = vsyncpa [#allocation7], 1
    %s1357 = scalar_lea.sflag [#allocation7], 1
    %1358 = vsyncpa %s1357, 1
    %1359 = vsyncpa [#allocation10], 1
    %s1360 = scalar_lea.sflag [#allocation10], 1
    %1361 = vsyncpa %s1360, 1
    %1362 = vsyncpa [#allocation13], 1
    %s1363 = scalar_lea.sflag [#allocation13], 1
    %1364 = vsyncpa %s1363, 1
    %1365 = vsyncpa [#allocation16], 1
    %s1366 = scalar_lea.sflag [#allocation16], 1
    %1367 = vsyncpa %s1366, 1
    %1368 = vsyncpa [#allocation5], 1
    %s1369 = scalar_lea.sflag [#allocation5], 1
    %1370 = vsyncpa %s1369, 1
    %1371 = vsyncpa [#allocation20], 1
    %s1372 = scalar_lea.sflag [#allocation20], 1
    %1373 = vsyncpa %s1372, 1

</llo_original>
